<compile_context>
chip_gen: v6e
topology: v6e:2x2x1
jax: 0.10.0
libtpu: 0.0.40
codegen_flags: <defaults>
</compile_context>

<pallas_src>
import jax
import jax.numpy as jnp
from jax.experimental import pallas as pl
from jax.experimental.pallas import tpu as pltpu

_BN_EPS = 1e-5

# SMEM scalar-parameter layout.
_BG, _G1, _B1, _BX, _G2, _B2, _PS, _PB, _G3, _B3 = range(10)


def _pad8(r):
    return ((r + 7) // 8) * 8


def _padlane(c):
    return ((c + 127) // 128) * 128


def _plan(N, C, HW, in_itemsize, out_itemsize, hw_tile, stash_mode, budget_bytes):
    """Pick stash mode, HW tile and an explicit VMEM limit."""
    stash_row = _pad8(N) * _padlane(HW) * 4
    if stash_mode == "auto":
        full_stash = (2 * stash_row) <= budget_bytes // 2
    else:
        full_stash = (stash_mode == "full")
    stash_bytes = (2 if full_stash else 1) * stash_row
    # TODO(synk): for inputs where even the single-row psi stash exceeds VMEM
    # (huge N*H*W), add a batch-tiling grid axis with per-slice partial stats.

    def step_bytes(t):
        tl = _padlane(t)
        return (2 * 2 * _pad8(N * C) * tl * in_itemsize      # g, x double-buffered
                + 2 * _pad8(N) * tl * out_itemsize           # out double-buffered
                + 8 * tl * 4                                  # stats scratch
                + 2 * 2 * _pad8(N * C) * 128 * 4)             # weight columns

    if hw_tile is None:
        if HW % 128 != 0:
            # TODO(synk): pad/mask the pixel axis to a lane multiple instead of a
            # whole-extent block for very large ragged images.
            hw_tile = HW
        else:
            remaining = max(budget_bytes - stash_bytes, 4 * 1024 * 1024)
            hw_tile = 128
            t = 128
            while t <= HW:
                if HW % t == 0 and step_bytes(t) <= remaining:
                    hw_tile = t
                t += 128
    if HW % hw_tile != 0:
        hw_tile = HW

    vmem_limit = int(min(max(stash_bytes + step_bytes(hw_tile) + (4 << 20), 16 << 20),
                         60 << 20))
    return hw_tile, full_stash, vmem_limit


def _make_kernel(N, C, hw_tile, total_m, full_stash):
    inv_m = 1.0 / float(total_m)
    T = hw_tile
    lane_aligned = (T % 128 == 0)

    def kernel(sp_ref, wgc_ref, wxc_ref, g_ref, x_ref, out_ref, *scratch):
        if full_stash:
            stash_a, stash_b, stats = scratch      # stash_a: g1 then psi; stash_b: x1
        else:
            stash_a, stats = scratch               # stash_a: psi pre-BN activation
            stash_b = None

        phase = pl.program_id(0)
        tile = pl.program_id(1)

        col = tile * T
        if lane_aligned:
            col = pl.multiple_of(col, 128)

        def sp(i):                                  # scalar parameter from SMEM
            return sp_ref[i]

        def accum(row, v):                          # lane-partial sum/sumsq accumulate
            part = jnp.sum(v, axis=0, keepdims=True) if v.shape[0] > 1 else v
            stats[row:row + 1, :] = stats[row:row + 1, :] + part

        def bn_coef(sum_row, sq_row, gamma_idx, beta_idx):
            s = jnp.sum(stats[sum_row:sum_row + 1, :], axis=1, keepdims=True)
            sq = jnp.sum(stats[sq_row:sq_row + 1, :], axis=1, keepdims=True)
            mean = s * inv_m
            var = jnp.maximum(sq * inv_m - mean * mean, 0.0)   # one-pass, clamped
            scale = sp(gamma_idx) * jax.lax.rsqrt(var + _BN_EPS)
            shift = sp(beta_idx) - mean * scale
            return scale, shift                                 # (1, 1) each

        def coef(lane):                             # hoisted per-phase BN coefficients
            return stats[6:7, lane:lane + 1]

        def conv_rows():
            # Dense whole-block multiply by the per-row weight column, then reduce
            # the channel axis with per-image sublane sums -> per-image (1, T) rows.
            gp = g_ref[...].astype(jnp.float32) * wgc_ref[...]      # (N*C, T)
            xp = x_ref[...].astype(jnp.float32) * wxc_ref[...]      # (N*C, T)
            bg = jnp.full((1, T), sp(_BG), jnp.float32)             # hoisted broadcasts
            bx = jnp.full((1, T), sp(_BX), jnp.float32)
            g_rows, x_rows = [], []
            for n in range(N):
                sl = slice(n * C, (n + 1) * C)
                g_rows.append(jnp.sum(gp[sl, :], axis=0, keepdims=True) + bg)
                x_rows.append(jnp.sum(xp[sl, :], axis=0, keepdims=True) + bx)
            return g_rows, x_rows

        # ---------------- phase 0: conv activations + their BN statistics --------
        @pl.when(jnp.logical_and(phase == 0, tile == 0))
        def _():
            stats[...] = jnp.zeros_like(stats)

        @pl.when(phase == 0)
        def _():
            g_rows, x_rows = conv_rows()
            for n in range(N):
                g1n, x1n = g_rows[n], x_rows[n]
                if full_stash:
                    stash_a[n:n + 1, pl.ds(col, T)] = g1n
                    stash_b[n:n + 1, pl.ds(col, T)] = x1n
                accum(0, g1n)
                accum(1, g1n * g1n)
                accum(2, x1n)
                accum(3, x1n * x1n)

        # ---------------- phase 1: psi pre-BN activation + its statistics --------
        @pl.when(jnp.logical_and(phase == 1, tile == 0))
        def _():
            sc1, sh1 = bn_coef(0, 1, _G1, _B1)
            sc2, sh2 = bn_coef(2, 3, _G2, _B2)
            stats[6:7, 0:1] = sc1
            stats[6:7, 1:2] = sh1
            stats[6:7, 2:3] = sc2
            stats[6:7, 3:4] = sh2

        @pl.when(phase == 1)
        def _():
            sc1, sh1, sc2, sh2 = coef(0), coef(1), coef(2), coef(3)
            ps = jnp.full((1, T), sp(_PS), jnp.float32)
            pb = jnp.full((1, T), sp(_PB), jnp.float32)
            if full_stash:
                g1 = stash_a[:, pl.ds(col, T)]                       # (N, T)
                x1 = stash_b[:, pl.ds(col, T)]
                # relu(a-b)+relu(b-a) == |a-b|; psi's 2 convs are pre-folded (PS, PB)
                pr = jnp.abs((g1 * sc1 + sh1) - (x1 * sc2 + sh2)) * ps + pb
                stash_a[:, pl.ds(col, T)] = pr                       # reuse g1 rows
                accum(4, pr)
                accum(5, pr * pr)
            else:
                g_rows, x_rows = conv_rows()                         # degraded path
                for n in range(N):
                    prn = jnp.abs((g_rows[n] * sc1 + sh1)
                                  - (x_rows[n] * sc2 + sh2)) * ps + pb
                    stash_a[n:n + 1, pl.ds(col, T)] = prn
                    accum(4, prn)
                    accum(5, prn * prn)

        # ---------------- phase 2: BN3 + sigmoid, single dense store per tile ----
        @pl.when(jnp.logical_and(phase == 2, tile == 0))
        def _():
            sc3, sh3 = bn_coef(4, 5, _G3, _B3)
            stats[6:7, 4:5] = sc3
            stats[6:7, 5:6] = sh3

        @pl.when(phase == 2)
        def _():
            sc3, sh3 = coef(4), coef(5)
            pr = stash_a[:, pl.ds(col, T)]                           # (N, T)
            out_ref[...] = jax.nn.sigmoid(pr * sc3 + sh3).astype(out_ref.dtype)

    return kernel


def attention_block_pallas(g, x, params, *, hw_tile=None, stash_mode="auto",
                           vmem_budget_bytes=40 * 1024 * 1024):
    """Forward pass of Attention_block; g, x: NCHW (N, F_g, H, W) -> (N, 1, H, W)."""
    N, C, H, W = g.shape
    assert x.shape == g.shape
    HW = H * W
    M = N * HW

    F_g, F_int = params["wg"].shape
    assert C == F_g
    # The reference PyTorch module's psi applies Conv2d(F_int, 1) twice, which only
    # type-checks when F_int == 1.
    assert F_int == 1, "psi's second Conv2d(F_int, 1) requires F_int == 1"

    # Keep bf16 on the wire (upcast in-kernel); everything else computes in f32.
    if g.dtype not in (jnp.float32, jnp.bfloat16):
        g = g.astype(jnp.float32)
    x = x.astype(g.dtype)
    out_dtype = g.dtype

    # Free reshape of NCHW: pixels on lanes, (batch, channel) rows on sublanes.
    g2 = g.reshape(N * C, HW)
    x2 = x.reshape(N * C, HW)

    # Per-row weight columns (wg/wx tiled over batch) for the dense block multiply.
    wg_col = jnp.tile(params["wg"].reshape(C, 1).astype(jnp.float32), (N, 1))
    wx_col = jnp.tile(params["wx"].reshape(C, 1).astype(jnp.float32), (N, 1))

    # Fold psi's two 1x1 convs: (d*wp1+bp1)*wp2+bp2 = d*(wp1*wp2) + (bp1*wp2+bp2).
    wp1 = params["wp1"].reshape(())
    bp1 = params["bp1"].reshape(())
    wp2 = params["wp2"].reshape(())
    bp2 = params["bp2"].reshape(())

    scalars = jnp.stack([
        params["bg"].reshape(()),       # _BG
        params["gamma1"].reshape(()),   # _G1
        params["beta1"].reshape(()),    # _B1
        params["bx"].reshape(()),       # _BX
        params["gamma2"].reshape(()),   # _G2
        params["beta2"].reshape(()),    # _B2
        wp1 * wp2,                      # _PS
        bp1 * wp2 + bp2,                # _PB
        params["gamma3"].reshape(()),   # _G3
        params["beta3"].reshape(()),    # _B3
    ]).astype(jnp.float32)

    hw_tile, full_stash, vmem_limit = _plan(
        N, C, HW, g2.dtype.itemsize, jnp.dtype(out_dtype).itemsize,
        hw_tile, stash_mode, vmem_budget_bytes)
    n_tiles = HW // hw_tile
    last = n_tiles - 1

    kernel = _make_kernel(N, C, hw_tile, M, full_stash)

    # Frozen index maps: inputs fetched only in the phases that read them (stay on
    # the last-fetched block afterwards -> no refetch DMA); output is only DMA'd
    # back during phase 2.
    if full_stash:
        in_idx = lambda p, t: (0, jnp.where(p == 0, t, last))
    else:
        in_idx = lambda p, t: (0, jnp.where(p < 2, t, last))
    out_idx = lambda p, t: (0, jnp.where(p == 2, t, 0))
    const_idx = lambda p, t: (0, 0)

    scratch = [pltpu.VMEM((N, HW), jnp.float32)]               # g1 / psi stash
    if full_stash:
        scratch.append(pltpu.VMEM((N, HW), jnp.float32))       # x1 stash
    scratch.append(pltpu.VMEM((8, hw_tile), jnp.float32))      # BN stats + coefs

    out2 = pl.pallas_call(
        kernel,
        out_shape=jax.ShapeDtypeStruct((N, HW), out_dtype),
        grid=(3, n_tiles),                                     # (phase, hw-tile)
        in_specs=[
            pl.BlockSpec(memory_space=pltpu.MemorySpace.SMEM),         # scalar params
            pl.BlockSpec((N * C, 1), const_idx),                       # wg column
            pl.BlockSpec((N * C, 1), const_idx),                       # wx column
            pl.BlockSpec((N * C, hw_tile), in_idx),                    # g
            pl.BlockSpec((N * C, hw_tile), in_idx),                    # x
        ],
        out_specs=pl.BlockSpec((N, hw_tile), out_idx),                 # lane-dense out
        scratch_shapes=scratch,
        compiler_params=pltpu.CompilerParams(
            # Stats/stash are carried across both axes -> strictly sequential grid.
            # TODO(synk): v7x dual-TC split of the tile axis with CMEM-combined
            # partial statistics behind a core_barrier at each phase boundary.
            dimension_semantics=("arbitrary", "arbitrary"),
            vmem_limit_bytes=vmem_limit,
        ),
    )(scalars, wg_col, wx_col, g2, x2)

    return out2.reshape(N, 1, H, W)


def make_params(key, F_g, F_int):
    """Deterministic synthetic parameters matching the nn.Module's shapes."""
    ks = jax.random.split(key, 8)
    return {
        "wg": 0.2 * jax.random.normal(ks[0], (F_g, F_int), jnp.float32),
        "bg": 0.1 * jax.random.normal(ks[1], (1, F_int), jnp.float32),
        "gamma1": 1.0 + 0.1 * jax.random.normal(ks[2], (1, F_int), jnp.float32),
        "beta1": 0.1 * jax.random.normal(ks[3], (1, F_int), jnp.float32),
        "wx": 0.2 * jax.random.normal(ks[4], (F_g, F_int), jnp.float32),
        "bx": 0.1 * jax.random.normal(ks[5], (1, F_int), jnp.float32),
        "gamma2": jnp.full((1, F_int), 1.1, jnp.float32),
        "beta2": jnp.full((1, F_int), -0.05, jnp.float32),
        "wp1": 0.3 * jax.random.normal(ks[6], (F_int, 1), jnp.float32),
        "bp1": jnp.full((1, 1), 0.02, jnp.float32),
        "wp2": 0.3 * jax.random.normal(ks[7], (F_int, 1), jnp.float32),
        "bp2": jnp.full((1, 1), -0.01, jnp.float32),
        "gamma3": jnp.full((1, 1), 0.9, jnp.float32),
        "beta3": jnp.full((1, 1), 0.05, jnp.float32),
    }


def attention_block_ref(g, x, params):
    """Pure-JAX reference (textbook two-pass training BN) for correctness checks."""
    N, C, H, W = g.shape
    M = N * H * W
    gm = jnp.transpose(g, (0, 2, 3, 1)).reshape(M, C).astype(jnp.float32)
    xm = jnp.transpose(x, (0, 2, 3, 1)).reshape(M, C).astype(jnp.float32)

    def bn(y, gamma, beta):
        mean = jnp.mean(y, axis=0, keepdims=True)
        var = jnp.mean(jnp.square(y - mean), axis=0, keepdims=True)
        return (y - mean) * (gamma / jnp.sqrt(var + _BN_EPS)) + beta

    g1 = bn(gm @ params["wg"] + params["bg"], params["gamma1"], params["beta1"])
    x1 = bn(xm @ params["wx"] + params["bx"], params["gamma2"], params["beta2"])
    d = jnp.maximum(g1 - x1, 0.0) + jnp.maximum(x1 - g1, 0.0)
    p = d @ params["wp1"] + params["bp1"]
    p = p @ params["wp2"] + params["bp2"]
    p = jax.nn.sigmoid(bn(p, params["gamma3"], params["beta3"]))
    return jnp.transpose(p.reshape(N, H, W, 1), (0, 3, 1, 2))


if __name__ == "__main__":
    F_g, F_int = 4, 1          # F_int must be 1 for the reference module to run
    N, H, W = 2, 32, 32        # HW = 1024

    key = jax.random.PRNGKey(0)
    kg, kx, kp = jax.random.split(key, 3)
    g = jax.random.normal(kg, (N, F_g, H, W), jnp.float32)
    x = jax.random.normal(kx, (N, F_g, H, W), jnp.float32)
    params = make_params(kp, F_g, F_int)

    ref = attention_block_ref(g, x, params)

    configs = [
        dict(),                                     # auto tile (single tile), full stash
        dict(hw_tile=256),                          # tiled stats + frozen index maps
        dict(hw_tile=256, stash_mode="light"),      # degraded VMEM-budget path
    ]
    for cfg in configs:
        fn = jax.jit(lambda g_, x_, p_, cfg=cfg: attention_block_pallas(g_, x_, p_, **cfg))
        out = jax.block_until_ready(fn(g, x, params))
        assert out.shape == (N, 1, H, W)
        assert jnp.allclose(out, ref, atol=1e-5, rtol=1e-4), f"mismatch vs reference: {cfg}"

    print("KERNEL_OK")
</pallas_src>

<mosaic_0001>
module attributes {stable_mosaic.version = 11 : i64} {
  func.func @kernel(%arg0: i32, %arg1: i32, %arg2: memref<10xf32, #tpu.memory_space<smem>>, %arg3: memref<8x1xf32, #tpu.memory_space<vmem>>, %arg4: memref<8x1xf32, #tpu.memory_space<vmem>>, %arg5: memref<8x1024xf32, #tpu.memory_space<vmem>>, %arg6: memref<8x1024xf32, #tpu.memory_space<vmem>>, %arg7: memref<2x1024xf32, #tpu.memory_space<vmem>>, %arg8: memref<2x1024xf32, #tpu.memory_space<vmem>>, %arg9: memref<2x1024xf32, #tpu.memory_space<vmem>>, %arg10: memref<8x1024xf32, #tpu.memory_space<vmem>>) attributes {dimension_semantics = [#tpu.dimension_semantics<arbitrary>, #tpu.dimension_semantics<arbitrary>], iteration_bounds = array<i64: 3, 1>, scalar_prefetch = 0 : i64, scratch_operands = 3 : i64, tpu.core_type = #tpu.core_type<tc>, window_params = [{transform_indices = @transform_0, window_bounds = array<i64: 10>}, {pipeline_mode = #tpu.pipeline_mode<synchronous>, transform_indices = @transform_1, window_bounds = array<i64: 8, 1>}, {pipeline_mode = #tpu.pipeline_mode<synchronous>, transform_indices = @transform_2, window_bounds = array<i64: 8, 1>}, {transform_indices = @transform_3, window_bounds = array<i64: 8, 1024>}, {transform_indices = @transform_4, window_bounds = array<i64: 8, 1024>}, {transform_indices = @transform_5, window_bounds = array<i64: 2, 1024>}]} {
    %c1024_i32 = arith.constant 1024 : i32
    %0 = arith.muli %arg1, %c1024_i32 : i32
    %1 = tpu.assume_multiple %0, 128 : i32
    %c0_i32 = arith.constant 0 : i32
    %2 = arith.cmpi eq, %arg0, %c0_i32 : i32
    %c0_i32_0 = arith.constant 0 : i32
    %3 = arith.cmpi eq, %arg1, %c0_i32_0 : i32
    %4 = arith.andi %2, %3 : i1
    %5 = arith.extui %4 : i1 to i32
    %c0_i32_1 = arith.constant 0 : i32
    %6 = arith.cmpi ne, %5, %c0_i32_1 : i32
    scf.if %6 {
      %cst = arith.constant 0.000000e+00 : f32
      %26 = vector.broadcast %cst : f32 to vector<8x1024xf32>
      %c0 = arith.constant 0 : index
      %c0_12 = arith.constant 0 : index
      %27 = vector.load %arg10[%c0, %c0_12] : memref<8x1024xf32, #tpu.memory_space<vmem>>, vector<8x1024xf32>
      tpu.vector_store %arg10[%c0, %c0_12], %26 {strides = array<i32>} : memref<8x1024xf32, #tpu.memory_space<vmem>>, vector<8x1024xf32>,
    } else {
    }
    %c0_i32_2 = arith.constant 0 : i32
    %7 = arith.cmpi eq, %arg0, %c0_i32_2 : i32
    %8 = arith.extui %7 : i1 to i32
    %c0_i32_3 = arith.constant 0 : i32
    %9 = arith.cmpi ne, %8, %c0_i32_3 : i32
    scf.if %9 {
      %c0 = arith.constant 0 : index
      %c0_12 = arith.constant 0 : index
      %26 = vector.load %arg5[%c0, %c0_12] : memref<8x1024xf32, #tpu.memory_space<vmem>>, vector<8x1024xf32>
      %c0_13 = arith.constant 0 : index
      %c0_14 = arith.constant 0 : index
      %27 = vector.load %arg3[%c0_13, %c0_14] : memref<8x1xf32, #tpu.memory_space<vmem>>, vector<8x1xf32>
      %28 = vector.broadcast %27 : vector<8x1xf32> to vector<8x1024xf32>
      %29 = arith.mulf %26, %28 : vector<8x1024xf32>
      %c0_15 = arith.constant 0 : index
      %c0_16 = arith.constant 0 : index
      %30 = vector.load %arg6[%c0_15, %c0_16] : memref<8x1024xf32, #tpu.memory_space<vmem>>, vector<8x1024xf32>
      %c0_17 = arith.constant 0 : index
      %c0_18 = arith.constant 0 : index
      %31 = vector.load %arg4[%c0_17, %c0_18] : memref<8x1xf32, #tpu.memory_space<vmem>>, vector<8x1xf32>
      %32 = vector.broadcast %31 : vector<8x1xf32> to vector<8x1024xf32>
      %33 = arith.mulf %30, %32 : vector<8x1024xf32>
      %c0_19 = arith.constant 0 : index
      %34 = memref.load %arg2[%c0_19] : memref<10xf32, #tpu.memory_space<smem>>
      %35 = vector.broadcast %34 : f32 to vector<1x1024xf32>
      %c3 = arith.constant 3 : index
      %36 = memref.load %arg2[%c3] : memref<10xf32, #tpu.memory_space<smem>>
      %37 = vector.broadcast %36 : f32 to vector<1x1024xf32>
      %38 = vector.extract_strided_slice %29 {offsets = [0, 0], sizes = [4, 1024], strides = [1, 1]} : vector<8x1024xf32> to vector<4x1024xf32>
      %cst = arith.constant dense<0.000000e+00> : vector<1024xf32>
      %39 = vector.multi_reduction <add>, %38, %cst [0] : vector<4x1024xf32> to vector<1024xf32>
      %40 = vector.shape_cast %39 : vector<1024xf32> to vector<1x1024xf32>
      %41 = arith.addf %40, %35 : vector<1x1024xf32>
      %42 = vector.extract_strided_slice %33 {offsets = [0, 0], sizes = [4, 1024], strides = [1, 1]} : vector<8x1024xf32> to vector<4x1024xf32>
      %cst_20 = arith.constant dense<0.000000e+00> : vector<1024xf32>
      %43 = vector.multi_reduction <add>, %42, %cst_20 [0] : vector<4x1024xf32> to vector<1024xf32>
      %44 = vector.shape_cast %43 : vector<1024xf32> to vector<1x1024xf32>
      %45 = arith.addf %44, %37 : vector<1x1024xf32>
      %46 = vector.extract_strided_slice %29 {offsets = [4, 0], sizes = [4, 1024], strides = [1, 1]} : vector<8x1024xf32> to vector<4x1024xf32>
      %cst_21 = arith.constant dense<0.000000e+00> : vector<1024xf32>
      %47 = vector.multi_reduction <add>, %46, %cst_21 [0] : vector<4x1024xf32> to vector<1024xf32>
      %48 = vector.shape_cast %47 : vector<1024xf32> to vector<1x1024xf32>
      %49 = arith.addf %48, %35 : vector<1x1024xf32>
      %50 = vector.extract_strided_slice %33 {offsets = [4, 0], sizes = [4, 1024], strides = [1, 1]} : vector<8x1024xf32> to vector<4x1024xf32>
      %cst_22 = arith.constant dense<0.000000e+00> : vector<1024xf32>
      %51 = vector.multi_reduction <add>, %50, %cst_22 [0] : vector<4x1024xf32> to vector<1024xf32>
      %52 = vector.shape_cast %51 : vector<1024xf32> to vector<1x1024xf32>
      %53 = arith.addf %52, %37 : vector<1x1024xf32>
      %c0_23 = arith.constant 0 : index
      %54 = arith.index_cast %1 : i32 to index
      %55 = vector.load %arg8[%c0_23, %54] : memref<2x1024xf32, #tpu.memory_space<vmem>>, vector<1x1024xf32>
      tpu.vector_store %arg8[%c0_23, %54], %41 {strides = array<i32>} : memref<2x1024xf32, #tpu.memory_space<vmem>>, vector<1x1024xf32>,
      %c0_24 = arith.constant 0 : index
      %56 = arith.index_cast %1 : i32 to index
      %57 = vector.load %arg9[%c0_24, %56] : memref<2x1024xf32, #tpu.memory_space<vmem>>, vector<1x1024xf32>
      tpu.vector_store %arg9[%c0_24, %56], %45 {strides = array<i32>} : memref<2x1024xf32, #tpu.memory_space<vmem>>, vector<1x1024xf32>,
      %c0_25 = arith.constant 0 : index
      %c0_26 = arith.constant 0 : index
      %58 = vector.load %arg10[%c0_25, %c0_26] : memref<8x1024xf32, #tpu.memory_space<vmem>>, vector<1x1024xf32>
      %59 = arith.addf %58, %41 : vector<1x1024xf32>
      %c0_27 = arith.constant 0 : index
      %c0_28 = arith.constant 0 : index
      %60 = vector.load %arg10[%c0_27, %c0_28] : memref<8x1024xf32, #tpu.memory_space<vmem>>, vector<1x1024xf32>
      tpu.vector_store %arg10[%c0_27, %c0_28], %59 {strides = array<i32>} : memref<8x1024xf32, #tpu.memory_space<vmem>>, vector<1x1024xf32>,
      %61 = arith.mulf %41, %41 : vector<1x1024xf32>
      %c1 = arith.constant 1 : index
      %c0_29 = arith.constant 0 : index
      %62 = vector.load %arg10[%c1, %c0_29] : memref<8x1024xf32, #tpu.memory_space<vmem>>, vector<1x1024xf32>
      %63 = arith.addf %62, %61 : vector<1x1024xf32>
      %c1_30 = arith.constant 1 : index
      %c0_31 = arith.constant 0 : index
      %64 = vector.load %arg10[%c1_30, %c0_31] : memref<8x1024xf32, #tpu.memory_space<vmem>>, vector<1x1024xf32>
      tpu.vector_store %arg10[%c1_30, %c0_31], %63 {strides = array<i32>} : memref<8x1024xf32, #tpu.memory_space<vmem>>, vector<1x1024xf32>,
      %c2 = arith.constant 2 : index
      %c0_32 = arith.constant 0 : index
      %65 = vector.load %arg10[%c2, %c0_32] : memref<8x1024xf32, #tpu.memory_space<vmem>>, vector<1x1024xf32>
      %66 = arith.addf %65, %45 : vector<1x1024xf32>
      %c2_33 = arith.constant 2 : index
      %c0_34 = arith.constant 0 : index
      %67 = vector.load %arg10[%c2_33, %c0_34] : memref<8x1024xf32, #tpu.memory_space<vmem>>, vector<1x1024xf32>
      tpu.vector_store %arg10[%c2_33, %c0_34], %66 {strides = array<i32>} : memref<8x1024xf32, #tpu.memory_space<vmem>>, vector<1x1024xf32>,
      %68 = arith.mulf %45, %45 : vector<1x1024xf32>
      %c3_35 = arith.constant 3 : index
      %c0_36 = arith.constant 0 : index
      %69 = vector.load %arg10[%c3_35, %c0_36] : memref<8x1024xf32, #tpu.memory_space<vmem>>, vector<1x1024xf32>
      %70 = arith.addf %69, %68 : vector<1x1024xf32>
      %c3_37 = arith.constant 3 : index
      %c0_38 = arith.constant 0 : index
      %71 = vector.load %arg10[%c3_37, %c0_38] : memref<8x1024xf32, #tpu.memory_space<vmem>>, vector<1x1024xf32>
      tpu.vector_store %arg10[%c3_37, %c0_38], %70 {strides = array<i32>} : memref<8x1024xf32, #tpu.memory_space<vmem>>, vector<1x1024xf32>,
      %c1_39 = arith.constant 1 : index
      %72 = arith.index_cast %1 : i32 to index
      %73 = vector.load %arg8[%c1_39, %72] : memref<2x1024xf32, #tpu.memory_space<vmem>>, vector<1x1024xf32>
      tpu.vector_store %arg8[%c1_39, %72], %49 {strides = array<i32>} : memref<2x1024xf32, #tpu.memory_space<vmem>>, vector<1x1024xf32>,
      %c1_40 = arith.constant 1 : index
      %74 = arith.index_cast %1 : i32 to index
      %75 = vector.load %arg9[%c1_40, %74] : memref<2x1024xf32, #tpu.memory_space<vmem>>, vector<1x1024xf32>
      tpu.vector_store %arg9[%c1_40, %74], %53 {strides = array<i32>} : memref<2x1024xf32, #tpu.memory_space<vmem>>, vector<1x1024xf32>,
      %c0_41 = arith.constant 0 : index
      %c0_42 = arith.constant 0 : index
      %76 = vector.load %arg10[%c0_41, %c0_42] : memref<8x1024xf32, #tpu.memory_space<vmem>>, vector<1x1024xf32>
      %77 = arith.addf %76, %49 : vector<1x1024xf32>
      %c0_43 = arith.constant 0 : index
      %c0_44 = arith.constant 0 : index
      %78 = vector.load %arg10[%c0_43, %c0_44] : memref<8x1024xf32, #tpu.memory_space<vmem>>, vector<1x1024xf32>
      tpu.vector_store %arg10[%c0_43, %c0_44], %77 {strides = array<i32>} : memref<8x1024xf32, #tpu.memory_space<vmem>>, vector<1x1024xf32>,
      %79 = arith.mulf %49, %49 : vector<1x1024xf32>
      %c1_45 = arith.constant 1 : index
      %c0_46 = arith.constant 0 : index
      %80 = vector.load %arg10[%c1_45, %c0_46] : memref<8x1024xf32, #tpu.memory_space<vmem>>, vector<1x1024xf32>
      %81 = arith.addf %80, %79 : vector<1x1024xf32>
      %c1_47 = arith.constant 1 : index
      %c0_48 = arith.constant 0 : index
      %82 = vector.load %arg10[%c1_47, %c0_48] : memref<8x1024xf32, #tpu.memory_space<vmem>>, vector<1x1024xf32>
      tpu.vector_store %arg10[%c1_47, %c0_48], %81 {strides = array<i32>} : memref<8x1024xf32, #tpu.memory_space<vmem>>, vector<1x1024xf32>,
      %c2_49 = arith.constant 2 : index
      %c0_50 = arith.constant 0 : index
      %83 = vector.load %arg10[%c2_49, %c0_50] : memref<8x1024xf32, #tpu.memory_space<vmem>>, vector<1x1024xf32>
      %84 = arith.addf %83, %53 : vector<1x1024xf32>
      %c2_51 = arith.constant 2 : index
      %c0_52 = arith.constant 0 : index
      %85 = vector.load %arg10[%c2_51, %c0_52] : memref<8x1024xf32, #tpu.memory_space<vmem>>, vector<1x1024xf32>
      tpu.vector_store %arg10[%c2_51, %c0_52], %84 {strides = array<i32>} : memref<8x1024xf32, #tpu.memory_space<vmem>>, vector<1x1024xf32>,
      %86 = arith.mulf %53, %53 : vector<1x1024xf32>
      %c3_53 = arith.constant 3 : index
      %c0_54 = arith.constant 0 : index
      %87 = vector.load %arg10[%c3_53, %c0_54] : memref<8x1024xf32, #tpu.memory_space<vmem>>, vector<1x1024xf32>
      %88 = arith.addf %87, %86 : vector<1x1024xf32>
      %c3_55 = arith.constant 3 : index
      %c0_56 = arith.constant 0 : index
      %89 = vector.load %arg10[%c3_55, %c0_56] : memref<8x1024xf32, #tpu.memory_space<vmem>>, vector<1x1024xf32>
      tpu.vector_store %arg10[%c3_55, %c0_56], %88 {strides = array<i32>} : memref<8x1024xf32, #tpu.memory_space<vmem>>, vector<1x1024xf32>,
    } else {
    }
    %c1_i32 = arith.constant 1 : i32
    %10 = arith.cmpi eq, %arg0, %c1_i32 : i32
    %c0_i32_4 = arith.constant 0 : i32
    %11 = arith.cmpi eq, %arg1, %c0_i32_4 : i32
    %12 = arith.andi %10, %11 : i1
    %13 = arith.extui %12 : i1 to i32
    %c0_i32_5 = arith.constant 0 : i32
    %14 = arith.cmpi ne, %13, %c0_i32_5 : i32
    scf.if %14 {
      %c0 = arith.constant 0 : index
      %c0_12 = arith.constant 0 : index
      %26 = vector.load %arg10[%c0, %c0_12] : memref<8x1024xf32, #tpu.memory_space<vmem>>, vector<1x1024xf32>
      %cst = arith.constant dense<0.000000e+00> : vector<1xf32>
      %27 = vector.multi_reduction <add>, %26, %cst [1] : vector<1x1024xf32> to vector<1xf32>
      %28 = vector.shape_cast %27 : vector<1xf32> to vector<1x1xf32>
      %c1 = arith.constant 1 : index
      %c0_13 = arith.constant 0 : index
      %29 = vector.load %arg10[%c1, %c0_13] : memref<8x1024xf32, #tpu.memory_space<vmem>>, vector<1x1024xf32>
      %cst_14 = arith.constant dense<0.000000e+00> : vector<1xf32>
      %30 = vector.multi_reduction <add>, %29, %cst_14 [1] : vector<1x1024xf32> to vector<1xf32>
      %31 = vector.shape_cast %30 : vector<1xf32> to vector<1x1xf32>
      %cst_15 = arith.constant 4.8828125E-4 : f32
      %32 = vector.broadcast %cst_15 : f32 to vector<1x1xf32>
      %33 = arith.mulf %28, %32 : vector<1x1xf32>
      %cst_16 = arith.constant 4.8828125E-4 : f32
      %34 = vector.broadcast %cst_16 : f32 to vector<1x1xf32>
      %35 = arith.mulf %31, %34 : vector<1x1xf32>
      %36 = arith.mulf %33, %33 : vector<1x1xf32>
      %37 = arith.subf %35, %36 : vector<1x1xf32>
      %cst_17 = arith.constant 0.000000e+00 : f32
      %38 = vector.broadcast %cst_17 : f32 to vector<1x1xf32>
      %39 = arith.maximumf %37, %38 : vector<1x1xf32>
      %c1_18 = arith.constant 1 : index
      %40 = memref.load %arg2[%c1_18] : memref<10xf32, #tpu.memory_space<smem>>
      %cst_19 = arith.constant 9.99999974E-6 : f32
      %41 = vector.broadcast %cst_19 : f32 to vector<1x1xf32>
      %42 = arith.addf %39, %41 : vector<1x1xf32>
      %43 = math.rsqrt %42 : vector<1x1xf32>
      %44 = vector.broadcast %40 : f32 to vector<1x1xf32>
      %45 = arith.mulf %44, %43 : vector<1x1xf32>
      %c2 = arith.constant 2 : index
      %46 = memref.load %arg2[%c2] : memref<10xf32, #tpu.memory_space<smem>>
      %47 = arith.mulf %33, %45 : vector<1x1xf32>
      %48 = vector.broadcast %46 : f32 to vector<1x1xf32>
      %49 = arith.subf %48, %47 : vector<1x1xf32>
      %c2_20 = arith.constant 2 : index
      %c0_21 = arith.constant 0 : index
      %50 = vector.load %arg10[%c2_20, %c0_21] : memref<8x1024xf32, #tpu.memory_space<vmem>>, vector<1x1024xf32>
      %cst_22 = arith.constant dense<0.000000e+00> : vector<1xf32>
      %51 = vector.multi_reduction <add>, %50, %cst_22 [1] : vector<1x1024xf32> to vector<1xf32>
      %52 = vector.shape_cast %51 : vector<1xf32> to vector<1x1xf32>
      %c3 = arith.constant 3 : index
      %c0_23 = arith.constant 0 : index
      %53 = vector.load %arg10[%c3, %c0_23] : memref<8x1024xf32, #tpu.memory_space<vmem>>, vector<1x1024xf32>
      %cst_24 = arith.constant dense<0.000000e+00> : vector<1xf32>
      %54 = vector.multi_reduction <add>, %53, %cst_24 [1] : vector<1x1024xf32> to vector<1xf32>
      %55 = vector.shape_cast %54 : vector<1xf32> to vector<1x1xf32>
      %cst_25 = arith.constant 4.8828125E-4 : f32
      %56 = vector.broadcast %cst_25 : f32 to vector<1x1xf32>
      %57 = arith.mulf %52, %56 : vector<1x1xf32>
      %cst_26 = arith.constant 4.8828125E-4 : f32
      %58 = vector.broadcast %cst_26 : f32 to vector<1x1xf32>
      %59 = arith.mulf %55, %58 : vector<1x1xf32>
      %60 = arith.mulf %57, %57 : vector<1x1xf32>
      %61 = arith.subf %59, %60 : vector<1x1xf32>
      %cst_27 = arith.constant 0.000000e+00 : f32
      %62 = vector.broadcast %cst_27 : f32 to vector<1x1xf32>
      %63 = arith.maximumf %61, %62 : vector<1x1xf32>
      %c4 = arith.constant 4 : index
      %64 = memref.load %arg2[%c4] : memref<10xf32, #tpu.memory_space<smem>>
      %cst_28 = arith.constant 9.99999974E-6 : f32
      %65 = vector.broadcast %cst_28 : f32 to vector<1x1xf32>
      %66 = arith.addf %63, %65 : vector<1x1xf32>
      %67 = math.rsqrt %66 : vector<1x1xf32>
      %68 = vector.broadcast %64 : f32 to vector<1x1xf32>
      %69 = arith.mulf %68, %67 : vector<1x1xf32>
      %c5 = arith.constant 5 : index
      %70 = memref.load %arg2[%c5] : memref<10xf32, #tpu.memory_space<smem>>
      %71 = arith.mulf %57, %69 : vector<1x1xf32>
      %72 = vector.broadcast %70 : f32 to vector<1x1xf32>
      %73 = arith.subf %72, %71 : vector<1x1xf32>
      %c6 = arith.constant 6 : index
      %c0_29 = arith.constant 0 : index
      %74 = vector.load %arg10[%c6, %c0_29] : memref<8x1024xf32, #tpu.memory_space<vmem>>, vector<1x1xf32>
      tpu.vector_store %arg10[%c6, %c0_29], %45 {strides = array<i32>} : memref<8x1024xf32, #tpu.memory_space<vmem>>, vector<1x1xf32>,
      %c6_30 = arith.constant 6 : index
      %c1_31 = arith.constant 1 : index
      %75 = vector.load %arg10[%c6_30, %c1_31] : memref<8x1024xf32, #tpu.memory_space<vmem>>, vector<1x1xf32>
      tpu.vector_store %arg10[%c6_30, %c1_31], %49 {strides = array<i32>} : memref<8x1024xf32, #tpu.memory_space<vmem>>, vector<1x1xf32>,
      %c6_32 = arith.constant 6 : index
      %c2_33 = arith.constant 2 : index
      %76 = vector.load %arg10[%c6_32, %c2_33] : memref<8x1024xf32, #tpu.memory_space<vmem>>, vector<1x1xf32>
      tpu.vector_store %arg10[%c6_32, %c2_33], %69 {strides = array<i32>} : memref<8x1024xf32, #tpu.memory_space<vmem>>, vector<1x1xf32>,
      %c6_34 = arith.constant 6 : index
      %c3_35 = arith.constant 3 : index
      %77 = vector.load %arg10[%c6_34, %c3_35] : memref<8x1024xf32, #tpu.memory_space<vmem>>, vector<1x1xf32>
      tpu.vector_store %arg10[%c6_34, %c3_35], %73 {strides = array<i32>} : memref<8x1024xf32, #tpu.memory_space<vmem>>, vector<1x1xf32>,
    } else {
    }
    %c1_i32_6 = arith.constant 1 : i32
    %15 = arith.cmpi eq, %arg0, %c1_i32_6 : i32
    %16 = arith.extui %15 : i1 to i32
    %c0_i32_7 = arith.constant 0 : i32
    %17 = arith.cmpi ne, %16, %c0_i32_7 : i32
    scf.if %17 {
      %c6 = arith.constant 6 : index
      %c0 = arith.constant 0 : index
      %26 = vector.load %arg10[%c6, %c0] : memref<8x1024xf32, #tpu.memory_space<vmem>>, vector<1x1xf32>
      %c6_12 = arith.constant 6 : index
      %c1 = arith.constant 1 : index
      %27 = vector.load %arg10[%c6_12, %c1] : memref<8x1024xf32, #tpu.memory_space<vmem>>, vector<1x1xf32>
      %c6_13 = arith.constant 6 : index
      %c2 = arith.constant 2 : index
      %28 = vector.load %arg10[%c6_13, %c2] : memref<8x1024xf32, #tpu.memory_space<vmem>>, vector<1x1xf32>
      %c6_14 = arith.constant 6 : index
      %c3 = arith.constant 3 : index
      %29 = vector.load %arg10[%c6_14, %c3] : memref<8x1024xf32, #tpu.memory_space<vmem>>, vector<1x1xf32>
      %c6_15 = arith.constant 6 : index
      %30 = memref.load %arg2[%c6_15] : memref<10xf32, #tpu.memory_space<smem>>
      %31 = vector.broadcast %30 : f32 to vector<1x1024xf32>
      %c7 = arith.constant 7 : index
      %32 = memref.load %arg2[%c7] : memref<10xf32, #tpu.memory_space<smem>>
      %33 = vector.broadcast %32 : f32 to vector<1x1024xf32>
      %c0_16 = arith.constant 0 : index
      %34 = arith.index_cast %1 : i32 to index
      %35 = vector.load %arg8[%c0_16, %34] : memref<2x1024xf32, #tpu.memory_space<vmem>>, vector<2x1024xf32>
      %c0_17 = arith.constant 0 : index
      %36 = arith.index_cast %1 : i32 to index
      %37 = vector.load %arg9[%c0_17, %36] : memref<2x1024xf32, #tpu.memory_space<vmem>>, vector<2x1024xf32>
      %38 = vector.broadcast %26 : vector<1x1xf32> to vector<2x1024xf32>
      %39 = arith.mulf %35, %38 : vector<2x1024xf32>
      %40 = vector.broadcast %27 : vector<1x1xf32> to vector<2x1024xf32>
      %41 = arith.addf %39, %40 : vector<2x1024xf32>
      %42 = vector.broadcast %28 : vector<1x1xf32> to vector<2x1024xf32>
      %43 = arith.mulf %37, %42 : vector<2x1024xf32>
      %44 = vector.broadcast %29 : vector<1x1xf32> to vector<2x1024xf32>
      %45 = arith.addf %43, %44 : vector<2x1024xf32>
      %46 = arith.subf %41, %45 : vector<2x1024xf32>
      %47 = math.absf %46 : vector<2x1024xf32>
      %48 = vector.broadcast %31 : vector<1x1024xf32> to vector<2x1024xf32>
      %49 = arith.mulf %47, %48 : vector<2x1024xf32>
      %50 = vector.broadcast %33 : vector<1x1024xf32> to vector<2x1024xf32>
      %51 = arith.addf %49, %50 : vector<2x1024xf32>
      %c0_18 = arith.constant 0 : index
      %52 = arith.index_cast %1 : i32 to index
      %53 = vector.load %arg8[%c0_18, %52] : memref<2x1024xf32, #tpu.memory_space<vmem>>, vector<2x1024xf32>
      tpu.vector_store %arg8[%c0_18, %52], %51 {strides = array<i32>} : memref<2x1024xf32, #tpu.memory_space<vmem>>, vector<2x1024xf32>,
      %cst = arith.constant dense<0.000000e+00> : vector<1024xf32>
      %54 = vector.multi_reduction <add>, %51, %cst [0] : vector<2x1024xf32> to vector<1024xf32>
      %55 = vector.shape_cast %54 : vector<1024xf32> to vector<1x1024xf32>
      %c4 = arith.constant 4 : index
      %c0_19 = arith.constant 0 : index
      %56 = vector.load %arg10[%c4, %c0_19] : memref<8x1024xf32, #tpu.memory_space<vmem>>, vector<1x1024xf32>
      %57 = arith.addf %56, %55 : vector<1x1024xf32>
      %c4_20 = arith.constant 4 : index
      %c0_21 = arith.constant 0 : index
      %58 = vector.load %arg10[%c4_20, %c0_21] : memref<8x1024xf32, #tpu.memory_space<vmem>>, vector<1x1024xf32>
      tpu.vector_store %arg10[%c4_20, %c0_21], %57 {strides = array<i32>} : memref<8x1024xf32, #tpu.memory_space<vmem>>, vector<1x1024xf32>,
      %59 = arith.mulf %51, %51 : vector<2x1024xf32>
      %cst_22 = arith.constant dense<0.000000e+00> : vector<1024xf32>
      %60 = vector.multi_reduction <add>, %59, %cst_22 [0] : vector<2x1024xf32> to vector<1024xf32>
      %61 = vector.shape_cast %60 : vector<1024xf32> to vector<1x1024xf32>
      %c5 = arith.constant 5 : index
      %c0_23 = arith.constant 0 : index
      %62 = vector.load %arg10[%c5, %c0_23] : memref<8x1024xf32, #tpu.memory_space<vmem>>, vector<1x1024xf32>
      %63 = arith.addf %62, %61 : vector<1x1024xf32>
      %c5_24 = arith.constant 5 : index
      %c0_25 = arith.constant 0 : index
      %64 = vector.load %arg10[%c5_24, %c0_25] : memref<8x1024xf32, #tpu.memory_space<vmem>>, vector<1x1024xf32>
      tpu.vector_store %arg10[%c5_24, %c0_25], %63 {strides = array<i32>} : memref<8x1024xf32, #tpu.memory_space<vmem>>, vector<1x1024xf32>,
    } else {
    }
    %c2_i32 = arith.constant 2 : i32
    %18 = arith.cmpi eq, %arg0, %c2_i32 : i32
    %c0_i32_8 = arith.constant 0 : i32
    %19 = arith.cmpi eq, %arg1, %c0_i32_8 : i32
    %20 = arith.andi %18, %19 : i1
    %21 = arith.extui %20 : i1 to i32
    %c0_i32_9 = arith.constant 0 : i32
    %22 = arith.cmpi ne, %21, %c0_i32_9 : i32
    scf.if %22 {
      %c4 = arith.constant 4 : index
      %c0 = arith.constant 0 : index
      %26 = vector.load %arg10[%c4, %c0] : memref<8x1024xf32, #tpu.memory_space<vmem>>, vector<1x1024xf32>
      %cst = arith.constant dense<0.000000e+00> : vector<1xf32>
      %27 = vector.multi_reduction <add>, %26, %cst [1] : vector<1x1024xf32> to vector<1xf32>
      %28 = vector.shape_cast %27 : vector<1xf32> to vector<1x1xf32>
      %c5 = arith.constant 5 : index
      %c0_12 = arith.constant 0 : index
      %29 = vector.load %arg10[%c5, %c0_12] : memref<8x1024xf32, #tpu.memory_space<vmem>>, vector<1x1024xf32>
      %cst_13 = arith.constant dense<0.000000e+00> : vector<1xf32>
      %30 = vector.multi_reduction <add>, %29, %cst_13 [1] : vector<1x1024xf32> to vector<1xf32>
      %31 = vector.shape_cast %30 : vector<1xf32> to vector<1x1xf32>
      %cst_14 = arith.constant 4.8828125E-4 : f32
      %32 = vector.broadcast %cst_14 : f32 to vector<1x1xf32>
      %33 = arith.mulf %28, %32 : vector<1x1xf32>
      %cst_15 = arith.constant 4.8828125E-4 : f32
      %34 = vector.broadcast %cst_15 : f32 to vector<1x1xf32>
      %35 = arith.mulf %31, %34 : vector<1x1xf32>
      %36 = arith.mulf %33, %33 : vector<1x1xf32>
      %37 = arith.subf %35, %36 : vector<1x1xf32>
      %cst_16 = arith.constant 0.000000e+00 : f32
      %38 = vector.broadcast %cst_16 : f32 to vector<1x1xf32>
      %39 = arith.maximumf %37, %38 : vector<1x1xf32>
      %c8 = arith.constant 8 : index
      %40 = memref.load %arg2[%c8] : memref<10xf32, #tpu.memory_space<smem>>
      %cst_17 = arith.constant 9.99999974E-6 : f32
      %41 = vector.broadcast %cst_17 : f32 to vector<1x1xf32>
      %42 = arith.addf %39, %41 : vector<1x1xf32>
      %43 = math.rsqrt %42 : vector<1x1xf32>
      %44 = vector.broadcast %40 : f32 to vector<1x1xf32>
      %45 = arith.mulf %44, %43 : vector<1x1xf32>
      %c9 = arith.constant 9 : index
      %46 = memref.load %arg2[%c9] : memref<10xf32, #tpu.memory_space<smem>>
      %47 = arith.mulf %33, %45 : vector<1x1xf32>
      %48 = vector.broadcast %46 : f32 to vector<1x1xf32>
      %49 = arith.subf %48, %47 : vector<1x1xf32>
      %c6 = arith.constant 6 : index
      %c4_18 = arith.constant 4 : index
      %50 = vector.load %arg10[%c6, %c4_18] : memref<8x1024xf32, #tpu.memory_space<vmem>>, vector<1x1xf32>
      tpu.vector_store %arg10[%c6, %c4_18], %45 {strides = array<i32>} : memref<8x1024xf32, #tpu.memory_space<vmem>>, vector<1x1xf32>,
      %c6_19 = arith.constant 6 : index
      %c5_20 = arith.constant 5 : index
      %51 = vector.load %arg10[%c6_19, %c5_20] : memref<8x1024xf32, #tpu.memory_space<vmem>>, vector<1x1xf32>
      tpu.vector_store %arg10[%c6_19, %c5_20], %49 {strides = array<i32>} : memref<8x1024xf32, #tpu.memory_space<vmem>>, vector<1x1xf32>,
    } else {
    }
    %c2_i32_10 = arith.constant 2 : i32
    %23 = arith.cmpi eq, %arg0, %c2_i32_10 : i32
    %24 = arith.extui %23 : i1 to i32
    %c0_i32_11 = arith.constant 0 : i32
    %25 = arith.cmpi ne, %24, %c0_i32_11 : i32
    scf.if %25 {
      %c6 = arith.constant 6 : index
      %c4 = arith.constant 4 : index
      %26 = vector.load %arg10[%c6, %c4] : memref<8x1024xf32, #tpu.memory_space<vmem>>, vector<1x1xf32>
      %c6_12 = arith.constant 6 : index
      %c5 = arith.constant 5 : index
      %27 = vector.load %arg10[%c6_12, %c5] : memref<8x1024xf32, #tpu.memory_space<vmem>>, vector<1x1xf32>
      %c0 = arith.constant 0 : index
      %28 = arith.index_cast %1 : i32 to index
      %29 = vector.load %arg8[%c0, %28] : memref<2x1024xf32, #tpu.memory_space<vmem>>, vector<2x1024xf32>
      %30 = vector.broadcast %26 : vector<1x1xf32> to vector<2x1024xf32>
      %31 = arith.mulf %29, %30 : vector<2x1024xf32>
      %32 = vector.broadcast %27 : vector<1x1xf32> to vector<2x1024xf32>
      %33 = arith.addf %31, %32 : vector<2x1024xf32>
      %34 = arith.negf %33 : vector<2x1024xf32>
      %35 = math.exp %34 : vector<2x1024xf32>
      %cst = arith.constant 1.000000e+00 : f32
      %36 = vector.broadcast %cst : f32 to vector<2x1024xf32>
      %37 = arith.addf %36, %35 : vector<2x1024xf32>
      %38 = arith.divf %36, %37 : vector<2x1024xf32>
      %c0_13 = arith.constant 0 : index
      %c0_14 = arith.constant 0 : index
      %39 = vector.load %arg7[%c0_13, %c0_14] : memref<2x1024xf32, #tpu.memory_space<vmem>>, vector<2x1024xf32>
      tpu.vector_store %arg7[%c0_13, %c0_14], %38 {strides = array<i32>} : memref<2x1024xf32, #tpu.memory_space<vmem>>, vector<2x1024xf32>,
    } else {
    }
    return
  }
  func.func @transform_0(%arg0: i32, %arg1: i32) -> i32 {
    %c0_i32 = arith.constant 0 : i32
    %c0_i32_0 = arith.constant 0 : i32
    return %c0_i32 : i32
  }
  func.func @transform_1(%arg0: i32, %arg1: i32) -> (i32, i32) {
    %c0_i32 = arith.constant 0 : i32
    %c0_i32_0 = arith.constant 0 : i32
    %c0_i32_1 = arith.constant 0 : i32
    return %c0_i32, %c0_i32_0 : i32, i32
  }
  func.func @transform_2(%arg0: i32, %arg1: i32) -> (i32, i32) {
    %c0_i32 = arith.constant 0 : i32
    %c0_i32_0 = arith.constant 0 : i32
    %c0_i32_1 = arith.constant 0 : i32
    return %c0_i32, %c0_i32_0 : i32, i32
  }
  func.func @transform_3(%arg0: i32, %arg1: i32) -> (i32, i32) {
    %c0_i32 = arith.constant 0 : i32
    %0 = arith.cmpi eq, %arg0, %c0_i32 : i32
    %c0_i32_0 = arith.constant 0 : i32
    %1 = arith.select %0, %arg1, %c0_i32_0 : i32
    %c0_i32_1 = arith.constant 0 : i32
    %c0_i32_2 = arith.constant 0 : i32
    return %c0_i32_1, %1 : i32, i32
  }
  func.func @transform_4(%arg0: i32, %arg1: i32) -> (i32, i32) {
    %c0_i32 = arith.constant 0 : i32
    %0 = arith.cmpi eq, %arg0, %c0_i32 : i32
    %c0_i32_0 = arith.constant 0 : i32
    %1 = arith.select %0, %arg1, %c0_i32_0 : i32
    %c0_i32_1 = arith.constant 0 : i32
    %c0_i32_2 = arith.constant 0 : i32
    return %c0_i32_1, %1 : i32, i32
  }
  func.func @transform_5(%arg0: i32, %arg1: i32) -> (i32, i32) {
    %c2_i32 = arith.constant 2 : i32
    %0 = arith.cmpi eq, %arg0, %c2_i32 : i32
    %c0_i32 = arith.constant 0 : i32
    %1 = arith.select %0, %arg1, %c0_i32 : i32
    %c0_i32_0 = arith.constant 0 : i32
    %c0_i32_1 = arith.constant 0 : i32
    return %c0_i32_0, %1 : i32, i32
  }
}

</mosaic_0001>

<llo_original>
// kernel: _lambda_.1
$region0: #{_lambda_.1}
  #allocation0 [shape = 'u32[]', space=smem, size = 0x4, offset = 0x4, fixed_abs, tag = 'smem constant byte address 0x4 - core index']
  #allocation1 [shape = 'u32[144,128]{1,0:T(1,128)}', space=vmem, size = 0x12000, scoped, tag = 'internal scratch']
  #allocation2 [shape = 'f32[2,1024]{1,0:T(2,128)}', space=vmem, size = 0x2000, scoped, tag = 'scratch operand']
  #allocation3 [shape = 'f32[2,1024]{1,0:T(2,128)}', space=vmem, size = 0x2000, scoped, tag = 'scratch operand']
  #allocation4 [shape = 'f32[8,1024]{1,0:T(8,128)}', space=vmem, size = 0x8000, scoped, tag = 'scratch operand']
  %s0 = inlined_call_operand.vmem [shape: f32[10], index: 0, kind: input, shape index: {}]
  %s1 = inlined_call_operand.vmem [shape: f32[8,1], index: 1, kind: input, shape index: {}]
  %s2 = inlined_call_operand.vmem [shape: f32[8,1], index: 2, kind: input, shape index: {}]
  %s3 = inlined_call_operand.vmem [shape: f32[8,1024], index: 3, kind: input, shape index: {}]
  %s4 = inlined_call_operand.vmem [shape: f32[8,1024], index: 4, kind: input, shape index: {}]
  %s5 = inlined_call_operand.vmem [shape: f32[2,1024], index: 5, kind: output, shape index: {}]
  %s6 = sld [smem:[#allocation0]]
  $region81: #{_lambda_.1} parent=0
    _
  %s8 = ssub.s32 1, %s6
  %s9 = scalar_select 0, %s8, %s6
  $region1: #{_lambda_.1} parent=0
    #allocation5 [shape = 'u8[512]{0}', space=smem, size = 0x200, scoped, tag = 'input window, operand 0, single buffered']
    #allocation6 [shape = 's32[2]{0}', space=sflag, size = 0x8, scoped, tag = 'scoped memory for _lambda_.1']
    %10 = vsyncpa [#allocation6], 0
    loop: start=0, step=1, limit=5
    $region2: #{_lambda_.1} parent=1 // loop_pre_header
      _
    $region3: #{_lambda_.1} parent=1 // loop_header
      %s12 = sphi 0, %s16
      %p13 = scmp.ge.s32.totalorder %s12, 5
      %s19 = sphi 0, %s31
      %s20 = sphi 0, %s27
      %s21 = sphi 0, %s19
      %s22 = sphi 0, %s20
      %s23 = sphi 0, %s21
      %s24 = sphi 0, %s22
      %s32 = sphi 0, %s32
      %s34 = sphi 0, %s32
      %s35 = sphi 0, %s34
      %s49 = sphi 0, %s35
      %s53 = sphi 0, %s53
      %s55 = sphi 0, %s53
      %s56 = sphi 0, %s55
      %s70 = sphi 0, %s56
      %s74 = sphi 0, %s74
      %s76 = sphi 0, %s74
      %s77 = sphi 0, %s76
      %s91 = sphi 0, %s77
      %s101 = sphi 0, %s103
      %s104 = sphi 0, %s101
      %s105 = sphi 0, %s104
      %s121 = sphi 0, %s105
      %s131 = sphi 0, %s133
      %s134 = sphi 0, %s131
      %s135 = sphi 0, %s134
      %s151 = sphi 0, %s135
      %s161 = sphi 0, %s163
      %s164 = sphi 0, %s161
      %s165 = sphi 0, %s164
      %s181 = sphi 0, %s165
    $region4: #{_lambda_.1} parent=1 // loop_header_branch
      %15 = sbr.rel (%p13) target = $region8
    $region5: #{_lambda_.1} parent=1 // loop_body
      %s17 = ssub.s32 %s12, 1
      %s18 = ssub.s32 %s12, 2
      %s25 = sadd.s32 1, %s20
      %p26 = scmp.ge.s32.totalorder %s25, 1
      %s27 = scalar_select %p26, 0, %s25
      %s28 = sadd.s32 1, %s19
      %s29 = scalar_select %p26, %s28, %s19
      %p30 = scmp.ge.s32.totalorder %s29, 3
      %s31 = scalar_select %p30, 0, %s29
      %s33 = sadd.s32 %s32, 1
      %p36 = scmp.eq.s32.totalorder %s12, 2
      %p37 = scmp.ne.s32.totalorder %s32, %s34
      %p38 = scmp.eq.s32.totalorder %s12, 0
      %p39 = por %p37, %p38
      %p40 = scmp.ne.s32.totalorder %s32, %s34
      %p41 = scmp.eq.s32.totalorder %s17, 2
      %p42 = por %p40, %p41
      %p43 = scmp.ne.s32.totalorder %s34, %s35
      %p44 = scmp.eq.s32.totalorder %s17, 0
      %p45 = por %p43, %p44
      %p46 = scmp.ne.s32.totalorder %s34, %s35
      %p47 = scmp.eq.s32.totalorder %s18, 2
      %p48 = por %p46, %p47
      %p50 = scmp.ne.s32.totalorder %s35, %s49
      %p51 = scmp.eq.s32.totalorder %s18, 0
      %p52 = por %p50, %p51
      %s54 = sadd.s32 %s53, 1
      %p57 = scmp.eq.s32.totalorder %s12, 2
      %p58 = scmp.ne.s32.totalorder %s53, %s55
      %p59 = scmp.eq.s32.totalorder %s12, 0
      %p60 = por %p58, %p59
      %p61 = scmp.ne.s32.totalorder %s53, %s55
      %p62 = scmp.eq.s32.totalorder %s17, 2
      %p63 = por %p61, %p62
      %p64 = scmp.ne.s32.totalorder %s55, %s56
      %p65 = scmp.eq.s32.totalorder %s17, 0
      %p66 = por %p64, %p65
      %p67 = scmp.ne.s32.totalorder %s55, %s56
      %p68 = scmp.eq.s32.totalorder %s18, 2
      %p69 = por %p67, %p68
      %p71 = scmp.ne.s32.totalorder %s56, %s70
      %p72 = scmp.eq.s32.totalorder %s18, 0
      %p73 = por %p71, %p72
      %s75 = sadd.s32 %s74, 1
      %p78 = scmp.eq.s32.totalorder %s12, 2
      %p79 = scmp.ne.s32.totalorder %s74, %s76
      %p80 = scmp.eq.s32.totalorder %s12, 0
      %p81 = por %p79, %p80
      %p82 = scmp.ne.s32.totalorder %s74, %s76
      %p83 = scmp.eq.s32.totalorder %s17, 2
      %p84 = por %p82, %p83
      %p85 = scmp.ne.s32.totalorder %s76, %s77
      %p86 = scmp.eq.s32.totalorder %s17, 0
      %p87 = por %p85, %p86
      %p88 = scmp.ne.s32.totalorder %s76, %s77
      %p89 = scmp.eq.s32.totalorder %s18, 2
      %p90 = por %p88, %p89
      %p92 = scmp.ne.s32.totalorder %s77, %s91
      %p93 = scmp.eq.s32.totalorder %s18, 0
      %p94 = por %p92, %p93
      %p95 = scmp.eq.s32.totalorder %s19, 0
      %s96 = scalar_select %p95, %s20, 0
      %p97 = scmp.eq.s32.totalorder %s31, 0
      %s98 = scalar_select %p97, %s27, 0
      %s99 = ssub.s32 %s96, %s98
      %p100 = scmp.eq.s32.totalorder %s99, 0
      %s102 = sadd.s32 %s101, 1
      %s103 = scalar_select %p100, %s101, %s102
      %p106 = pneg %p100
      %p107 = scmp.eq.s32.totalorder %s12, 2
      %p108 = por %p106, %p107
      %p109 = scmp.ne.s32.totalorder %s101, %s104
      %p110 = scmp.eq.s32.totalorder %s12, 0
      %p111 = por %p109, %p110
      %p112 = scmp.ne.s32.totalorder %s101, %s104
      %p113 = scmp.eq.s32.totalorder %s17, 2
      %p114 = por %p112, %p113
      %p115 = scmp.ne.s32.totalorder %s104, %s105
      %p116 = scmp.eq.s32.totalorder %s17, 0
      %p117 = por %p115, %p116
      %p118 = scmp.ne.s32.totalorder %s104, %s105
      %p119 = scmp.eq.s32.totalorder %s18, 2
      %p120 = por %p118, %p119
      %p122 = scmp.ne.s32.totalorder %s105, %s121
      %p123 = scmp.eq.s32.totalorder %s18, 0
      %p124 = por %p122, %p123
      %p125 = scmp.eq.s32.totalorder %s19, 0
      %s126 = scalar_select %p125, %s20, 0
      %p127 = scmp.eq.s32.totalorder %s31, 0
      %s128 = scalar_select %p127, %s27, 0
      %s129 = ssub.s32 %s126, %s128
      %p130 = scmp.eq.s32.totalorder %s129, 0
      %s132 = sadd.s32 %s131, 1
      %s133 = scalar_select %p130, %s131, %s132
      %p136 = pneg %p130
      %p137 = scmp.eq.s32.totalorder %s12, 2
      %p138 = por %p136, %p137
      %p139 = scmp.ne.s32.totalorder %s131, %s134
      %p140 = scmp.eq.s32.totalorder %s12, 0
      %p141 = por %p139, %p140
      %p142 = scmp.ne.s32.totalorder %s131, %s134
      %p143 = scmp.eq.s32.totalorder %s17, 2
      %p144 = por %p142, %p143
      %p145 = scmp.ne.s32.totalorder %s134, %s135
      %p146 = scmp.eq.s32.totalorder %s17, 0
      %p147 = por %p145, %p146
      %p148 = scmp.ne.s32.totalorder %s134, %s135
      %p149 = scmp.eq.s32.totalorder %s18, 2
      %p150 = por %p148, %p149
      %p152 = scmp.ne.s32.totalorder %s135, %s151
      %p153 = scmp.eq.s32.totalorder %s18, 0
      %p154 = por %p152, %p153
      %p155 = scmp.eq.s32.totalorder %s19, 2
      %s156 = scalar_select %p155, %s20, 0
      %p157 = scmp.eq.s32.totalorder %s31, 2
      %s158 = scalar_select %p157, %s27, 0
      %s159 = ssub.s32 %s156, %s158
      %p160 = scmp.eq.s32.totalorder %s159, 0
      %s162 = sadd.s32 %s161, 1
      %s163 = scalar_select %p160, %s161, %s162
      %p166 = pneg %p160
      %p167 = scmp.eq.s32.totalorder %s12, 2
      %p168 = por %p166, %p167
      %p169 = scmp.ne.s32.totalorder %s161, %s164
      %p170 = scmp.eq.s32.totalorder %s12, 0
      %p171 = por %p169, %p170
      %p172 = scmp.ne.s32.totalorder %s161, %s164
      %p173 = scmp.eq.s32.totalorder %s17, 2
      %p174 = por %p172, %p173
      %p175 = scmp.ne.s32.totalorder %s164, %s165
      %p176 = scmp.eq.s32.totalorder %s17, 0
      %p177 = por %p175, %p176
      %p178 = scmp.ne.s32.totalorder %s164, %s165
      %p179 = scmp.eq.s32.totalorder %s18, 2
      %p180 = por %p178, %p179
      %p182 = scmp.ne.s32.totalorder %s165, %s181
      %p183 = scmp.eq.s32.totalorder %s18, 0
      %p184 = por %p182, %p183
      %p185 = scmp.le.s32.totalorder 1, %s12
      %p186 = scmp.lt.s32.totalorder %s12, 4
      %p187 = pnand %p185, %p186
      %p188 = pneg %p187
      // Predicated region
      $region9: #{_lambda_.1} parent=5 // pred_check
        _
      $region10: #{_lambda_.1} parent=5 // pred_check_branch
        %190 = sbr.rel (%p187) target = $region12
      $region11: #{_lambda_.1} parent=5 // pred_region
        %s191 = ssub.s32 %s12, 1
        // Predicated region
        $region13: #{_lambda_.1} parent=11 // pred_check
          %p192 = pneg %p45
        $region14: #{_lambda_.1} parent=11 // pred_check_branch
          %194 = sbr.rel (%p192) target = $region16
        $region15: #{_lambda_.1} parent=11 // pred_region
          %s196 = ssub.s32 16, 16
          %197 = vsyncadd [#allocation6], %s196
          %s199 = sshll.u32 %s0, 4
          %s200 = int_to_ptr.vmem [resolvable:$true] %s199
          %202 = dma.vmem_to_smem %s200, 16, [#allocation5], [#allocation6]
        $region16: #{_lambda_.1} parent=11 // pred_fallthru
          _
        // Predicated region
        $region17: #{_lambda_.1} parent=11 // pred_check
          %p203 = pneg %p66
        $region18: #{_lambda_.1} parent=11 // pred_check_branch
          %205 = sbr.rel (%p203) target = $region20
        $region19: #{_lambda_.1} parent=11 // pred_region
          _
        $region20: #{_lambda_.1} parent=11 // pred_fallthru
          _
        // Predicated region
        $region21: #{_lambda_.1} parent=11 // pred_check
          %p206 = pneg %p87
        $region22: #{_lambda_.1} parent=11 // pred_check_branch
          %208 = sbr.rel (%p206) target = $region24
        $region23: #{_lambda_.1} parent=11 // pred_region
          _
        $region24: #{_lambda_.1} parent=11 // pred_fallthru
          _
      $region12: #{_lambda_.1} parent=5 // pred_fallthru
        _
      %p209 = scmp.lt.s32.totalorder %s12, 3
      // Predicated region
      $region25: #{_lambda_.1} parent=5 // pred_check
        %p210 = pneg %p209
      $region26: #{_lambda_.1} parent=5 // pred_check_branch
        %212 = sbr.rel (%p210) target = $region28
      $region27: #{_lambda_.1} parent=5 // pred_region
        // Predicated region
        $region29: #{_lambda_.1} parent=27 // pred_check
          %p213 = pneg %p111
        $region30: #{_lambda_.1} parent=27 // pred_check_branch
          %215 = sbr.rel (%p213) target = $region32
        $region31: #{_lambda_.1} parent=27 // pred_region
          %p216 = scmp.eq.s32.totalorder %s19, 0
          %s217 = scalar_select %p216, %s20, 0
          %s218 = smul.u32 8, %s217
          %p219 = scmp.lt.s32.totalorder %s218, 7
          %s220 = scalar_select %p219, %s218, 7
          %s221 = smul.addr %s220, 8
          %s222 = scalar_lea.vmem %s3, %s221
          %p223 = scmp.eq.s32.totalorder %s19, 0
          %s224 = scalar_select %p223, %s20, 0
          %s225 = smul.u32 8, %s224
        $region32: #{_lambda_.1} parent=27 // pred_fallthru
          _
        // Predicated region
        $region33: #{_lambda_.1} parent=27 // pred_check
          %p226 = pneg %p141
        $region34: #{_lambda_.1} parent=27 // pred_check_branch
          %228 = sbr.rel (%p226) target = $region36
        $region35: #{_lambda_.1} parent=27 // pred_region
          %p229 = scmp.eq.s32.totalorder %s19, 0
          %s230 = scalar_select %p229, %s20, 0
          %s231 = smul.u32 8, %s230
          %p232 = scmp.lt.s32.totalorder %s231, 7
          %s233 = scalar_select %p232, %s231, 7
          %s234 = smul.addr %s233, 8
          %s235 = scalar_lea.vmem %s4, %s234
          %p236 = scmp.eq.s32.totalorder %s19, 0
          %s237 = scalar_select %p236, %s20, 0
          %s238 = smul.u32 8, %s237
        $region36: #{_lambda_.1} parent=27 // pred_fallthru
          _
      $region28: #{_lambda_.1} parent=5 // pred_fallthru
        _
      %p239 = scmp.le.s32.totalorder 1, %s12
      %p240 = scmp.lt.s32.totalorder %s12, 4
      %p241 = pnand %p239, %p240
      %p242 = pneg %p241
      // Predicated region
      $region37: #{_lambda_.1} parent=5 // pred_check
        _
      $region38: #{_lambda_.1} parent=5 // pred_check_branch
        %244 = sbr.rel (%p241) target = $region40
      $region39: #{_lambda_.1} parent=5 // pred_region
        %s245 = ssub.s32 %s12, 1
        // Predicated region
        $region41: #{_lambda_.1} parent=39 // pred_check
          %p246 = pneg %p45
        $region42: #{_lambda_.1} parent=39 // pred_check_branch
          %248 = sbr.rel (%p246) target = $region44
        $region43: #{_lambda_.1} parent=39 // pred_region
          %249 = dma.done [#allocation6], 16
        $region44: #{_lambda_.1} parent=39 // pred_fallthru
          _
        %250 = sfence
        %p251 = pneg %p45
        %p252 = pneg %p42
        %p253 = pneg %p66
        %p254 = pneg %p63
        %p255 = pneg %p87
        %p256 = pneg %p84
        %p257 = scmp.eq.s32.totalorder %s21, 0
        %s258 = scalar_select %p257, %s22, 0
        %s259 = smul.u32 8, %s258
        %p260 = scmp.lt.s32.totalorder %s259, 7
        %s261 = scalar_select %p260, %s259, 7
        %s262 = smul.addr %s261, 8
        %s263 = scalar_lea.vmem %s3, %s262
        %p264 = pneg %p117
        %p265 = pneg %p114
        %p266 = scmp.eq.s32.totalorder %s21, 0
        %s267 = scalar_select %p266, %s22, 0
        %s268 = smul.u32 8, %s267
        %p269 = scmp.lt.s32.totalorder %s268, 7
        %s270 = scalar_select %p269, %s268, 7
        %s271 = smul.addr %s270, 8
        %s272 = scalar_lea.vmem %s4, %s271
        %p273 = pneg %p147
        %p274 = pneg %p144
        %p275 = pneg %p177
        %p276 = pneg %p174
        %p277 = scmp.eq.s32.totalorder %s21, 2
        %s278 = scalar_select %p277, %s22, 0
        %s279 = smul.u32 8, %s278
        %p280 = scmp.lt.s32.totalorder %s279, 7
        %s281 = scalar_select %p280, %s279, 7
        %s282 = smul.addr %s281, 2
        %s283 = scalar_lea.vmem %s5, %s282
        %p284 = scmp.eq.s32.totalorder %s21, 0
        %s285 = scalar_select %p284, %s22, 0
        %s286 = smul.u32 8, %s285
        %p287 = scmp.lt.s32.totalorder %s286, 7
        %s288 = scalar_select %p287, %s286, 7
        %s289 = smul.addr %s288, 8
        %s290 = scalar_lea.vmem %s3, %s289
        %p291 = scmp.eq.s32.totalorder %s21, 0
        %s292 = scalar_select %p291, %s22, 0
        %s293 = smul.u32 8, %s292
        %p294 = scmp.eq.s32.totalorder %s21, 0
        %s295 = scalar_select %p294, %s22, 0
        %s296 = smul.u32 8, %s295
        %p297 = scmp.lt.s32.totalorder %s296, 7
        %s298 = scalar_select %p297, %s296, 7
        %s299 = smul.addr %s298, 8
        %s300 = scalar_lea.vmem %s4, %s299
        %p301 = scmp.eq.s32.totalorder %s21, 0
        %s302 = scalar_select %p301, %s22, 0
        %s303 = smul.u32 8, %s302
        %p304 = scmp.eq.s32.totalorder %s21, 2
        %s305 = scalar_select %p304, %s22, 0
        %s306 = smul.u32 8, %s305
        %p307 = scmp.lt.s32.totalorder %s306, 7
        %s308 = scalar_select %p307, %s306, 7
        %s309 = smul.addr %s308, 2
        %s310 = scalar_lea.vmem %s5, %s309
        %p311 = scmp.eq.s32.totalorder %s21, 2
        %s312 = scalar_select %p311, %s22, 0
        %s313 = smul.u32 8, %s312
        %s314 = smul.u32 %s22, 1024
        %p315 = scmp.eq.s32.totalorder %s21, 0
        %p316 = scmp.eq.s32.totalorder %s22, 0
        %p317 = pnand %p315, %p316
        %p318 = pneg %p317
        // Predicated region
        $region45: #{_lambda_.1} parent=39 // pred_check
          _
        $region46: #{_lambda_.1} parent=39 // pred_check_branch
          %320 = sbr.rel (%p317) target = $region48
        $region47: #{_lambda_.1} parent=39 // pred_region
          %321 = vst [vmem:[#allocation4] sm:$0xff] 0.0
          %322 = vst [vmem:[#allocation4 + $0x8] sm:$0xff] 0.0
          %323 = vst [vmem:[#allocation4 + $0x10] sm:$0xff] 0.0
          %324 = vst [vmem:[#allocation4 + $0x18] sm:$0xff] 0.0
          %325 = vst [vmem:[#allocation4 + $0x20] sm:$0xff] 0.0
          %326 = vst [vmem:[#allocation4 + $0x28] sm:$0xff] 0.0
          %327 = vst [vmem:[#allocation4 + $0x30] sm:$0xff] 0.0
          %328 = vst [vmem:[#allocation4 + $0x38] sm:$0xff] 0.0
        $region48: #{_lambda_.1} parent=39 // pred_fallthru
          _
        // Predicated region
        $region49: #{_lambda_.1} parent=39 // pred_check
          %p329 = pneg %p315
        $region50: #{_lambda_.1} parent=39 // pred_check_branch
          %331 = sbr.rel (%p329) target = $region52
        $region51: #{_lambda_.1} parent=39 // pred_region
          %v332 = vld [vmem:[%s290] sm:$0xff]
          %v333 = vld [vmem:[%s290 + $0x8] sm:$0xff]
          %v334 = vld [vmem:[%s290 + $0x10] sm:$0xff]
          %v335 = vld [vmem:[%s290 + $0x18] sm:$0xff]
          %v336 = vld [vmem:[%s290 + $0x20] sm:$0xff]
          %v337 = vld [vmem:[%s290 + $0x28] sm:$0xff]
          %v338 = vld [vmem:[%s290 + $0x30] sm:$0xff]
          %v339 = vld [vmem:[%s290 + $0x38] sm:$0xff]
          %v340 = vld [vmem:[%s1] sm:$0xff]
          %342 = vset.pattern.permute.xlu0 0
          %343 = vperm.xlu0 %342, %v340
          %v344 = vpop.permute.xlu0 %343
          %v346 = vmul.f32 %v332, %v344
          %v347 = vmul.f32 %v333, %v344
          %v348 = vmul.f32 %v334, %v344
          %v349 = vmul.f32 %v335, %v344
          %v350 = vmul.f32 %v336, %v344
          %v351 = vmul.f32 %v337, %v344
          %v352 = vmul.f32 %v338, %v344
          %v353 = vmul.f32 %v339, %v344
          %v354 = vld [vmem:[%s300] sm:$0xff]
          %v355 = vld [vmem:[%s300 + $0x8] sm:$0xff]
          %v356 = vld [vmem:[%s300 + $0x10] sm:$0xff]
          %v357 = vld [vmem:[%s300 + $0x18] sm:$0xff]
          %v358 = vld [vmem:[%s300 + $0x20] sm:$0xff]
          %v359 = vld [vmem:[%s300 + $0x28] sm:$0xff]
          %v360 = vld [vmem:[%s300 + $0x30] sm:$0xff]
          %v361 = vld [vmem:[%s300 + $0x38] sm:$0xff]
          %v362 = vld [vmem:[%s2] sm:$0xff]
          %364 = vset.pattern.permute.xlu0 0
          %365 = vperm.xlu0 %364, %v362
          %v366 = vpop.permute.xlu0 %365
          %v368 = vmul.f32 %v354, %v366
          %v369 = vmul.f32 %v355, %v366
          %v370 = vmul.f32 %v356, %v366
          %v371 = vmul.f32 %v357, %v366
          %v372 = vmul.f32 %v358, %v366
          %v373 = vmul.f32 %v359, %v366
          %v374 = vmul.f32 %v360, %v366
          %v375 = vmul.f32 %v361, %v366
          %s376 = sld [smem:[#allocation5]]
          %v377 = vstv %s376
          %s378 = sld [smem:[#allocation5 + $0x3]]
          %v379 = vstv %s378
          %vm380 = vcmask 1043456
          %v381 = vsel %vm380, %v346, 0.0
          %v382 = vrot.slane %v381, 4
          %v383 = vadd.f32 %v381, %v382
          %v384 = vrot.slane %v383, 2
          %v385 = vadd.f32 %v383, %v384
          %v386 = vrot.slane %v385, 1
          %v387 = vadd.f32 %v385, %v386
          %v388 = vsel %vm380, %v347, 0.0
          %v389 = vrot.slane %v388, 4
          %v390 = vadd.f32 %v388, %v389
          %v391 = vrot.slane %v390, 2
          %v392 = vadd.f32 %v390, %v391
          %v393 = vrot.slane %v392, 1
          %v394 = vadd.f32 %v392, %v393
          %v395 = vsel %vm380, %v348, 0.0
          %v396 = vrot.slane %v395, 4
          %v397 = vadd.f32 %v395, %v396
          %v398 = vrot.slane %v397, 2
          %v399 = vadd.f32 %v397, %v398
          %v400 = vrot.slane %v399, 1
          %v401 = vadd.f32 %v399, %v400
          %v402 = vsel %vm380, %v349, 0.0
          %v403 = vrot.slane %v402, 4
          %v404 = vadd.f32 %v402, %v403
          %v405 = vrot.slane %v404, 2
          %v406 = vadd.f32 %v404, %v405
          %v407 = vrot.slane %v406, 1
          %v408 = vadd.f32 %v406, %v407
          %v409 = vsel %vm380, %v350, 0.0
          %v410 = vrot.slane %v409, 4
          %v411 = vadd.f32 %v409, %v410
          %v412 = vrot.slane %v411, 2
          %v413 = vadd.f32 %v411, %v412
          %v414 = vrot.slane %v413, 1
          %v415 = vadd.f32 %v413, %v414
          %v416 = vsel %vm380, %v351, 0.0
          %v417 = vrot.slane %v416, 4
          %v418 = vadd.f32 %v416, %v417
          %v419 = vrot.slane %v418, 2
          %v420 = vadd.f32 %v418, %v419
          %v421 = vrot.slane %v420, 1
          %v422 = vadd.f32 %v420, %v421
          %v423 = vsel %vm380, %v352, 0.0
          %v424 = vrot.slane %v423, 4
          %v425 = vadd.f32 %v423, %v424
          %v426 = vrot.slane %v425, 2
          %v427 = vadd.f32 %v425, %v426
          %v428 = vrot.slane %v427, 1
          %v429 = vadd.f32 %v427, %v428
          %v430 = vsel %vm380, %v353, 0.0
          %v431 = vrot.slane %v430, 4
          %v432 = vadd.f32 %v430, %v431
          %v433 = vrot.slane %v432, 2
          %v434 = vadd.f32 %v432, %v433
          %v435 = vrot.slane %v434, 1
          %v436 = vadd.f32 %v434, %v435
          %v437 = vadd.f32 %v387, %v377
          %v438 = vadd.f32 %v394, %v377
          %v439 = vadd.f32 %v401, %v377
          %v440 = vadd.f32 %v408, %v377
          %v441 = vadd.f32 %v415, %v377
          %v442 = vadd.f32 %v422, %v377
          %v443 = vadd.f32 %v429, %v377
          %v444 = vadd.f32 %v436, %v377
          %v445 = vsel %vm380, %v368, 0.0
          %v446 = vrot.slane %v445, 4
          %v447 = vadd.f32 %v445, %v446
          %v448 = vrot.slane %v447, 2
          %v449 = vadd.f32 %v447, %v448
          %v450 = vrot.slane %v449, 1
          %v451 = vadd.f32 %v449, %v450
          %v452 = vsel %vm380, %v369, 0.0
          %v453 = vrot.slane %v452, 4
          %v454 = vadd.f32 %v452, %v453
          %v455 = vrot.slane %v454, 2
          %v456 = vadd.f32 %v454, %v455
          %v457 = vrot.slane %v456, 1
          %v458 = vadd.f32 %v456, %v457
          %v459 = vsel %vm380, %v370, 0.0
          %v460 = vrot.slane %v459, 4
          %v461 = vadd.f32 %v459, %v460
          %v462 = vrot.slane %v461, 2
          %v463 = vadd.f32 %v461, %v462
          %v464 = vrot.slane %v463, 1
          %v465 = vadd.f32 %v463, %v464
          %v466 = vsel %vm380, %v371, 0.0
          %v467 = vrot.slane %v466, 4
          %v468 = vadd.f32 %v466, %v467
          %v469 = vrot.slane %v468, 2
          %v470 = vadd.f32 %v468, %v469
          %v471 = vrot.slane %v470, 1
          %v472 = vadd.f32 %v470, %v471
          %v473 = vsel %vm380, %v372, 0.0
          %v474 = vrot.slane %v473, 4
          %v475 = vadd.f32 %v473, %v474
          %v476 = vrot.slane %v475, 2
          %v477 = vadd.f32 %v475, %v476
          %v478 = vrot.slane %v477, 1
          %v479 = vadd.f32 %v477, %v478
          %v480 = vsel %vm380, %v373, 0.0
          %v481 = vrot.slane %v480, 4
          %v482 = vadd.f32 %v480, %v481
          %v483 = vrot.slane %v482, 2
          %v484 = vadd.f32 %v482, %v483
          %v485 = vrot.slane %v484, 1
          %v486 = vadd.f32 %v484, %v485
          %v487 = vsel %vm380, %v374, 0.0
          %v488 = vrot.slane %v487, 4
          %v489 = vadd.f32 %v487, %v488
          %v490 = vrot.slane %v489, 2
          %v491 = vadd.f32 %v489, %v490
          %v492 = vrot.slane %v491, 1
          %v493 = vadd.f32 %v491, %v492
          %v494 = vsel %vm380, %v375, 0.0
          %v495 = vrot.slane %v494, 4
          %v496 = vadd.f32 %v494, %v495
          %v497 = vrot.slane %v496, 2
          %v498 = vadd.f32 %v496, %v497
          %v499 = vrot.slane %v498, 1
          %v500 = vadd.f32 %v498, %v499
          %v501 = vadd.f32 %v451, %v379
          %v502 = vadd.f32 %v458, %v379
          %v503 = vadd.f32 %v465, %v379
          %v504 = vadd.f32 %v472, %v379
          %v505 = vadd.f32 %v479, %v379
          %v506 = vadd.f32 %v486, %v379
          %v507 = vadd.f32 %v493, %v379
          %v508 = vadd.f32 %v500, %v379
          %v517 = vrot.slane %v346, 4
          %v518 = vrot.slane %v347, 4
          %v519 = vrot.slane %v348, 4
          %v520 = vrot.slane %v349, 4
          %v521 = vrot.slane %v350, 4
          %v522 = vrot.slane %v351, 4
          %v523 = vrot.slane %v352, 4
          %v524 = vrot.slane %v353, 4
          %v533 = vsel %vm380, %v517, 0.0
          %v534 = vrot.slane %v533, 4
          %v535 = vadd.f32 %v533, %v534
          %v536 = vrot.slane %v535, 2
          %v537 = vadd.f32 %v535, %v536
          %v538 = vrot.slane %v537, 1
          %v539 = vadd.f32 %v537, %v538
          %v540 = vsel %vm380, %v518, 0.0
          %v541 = vrot.slane %v540, 4
          %v542 = vadd.f32 %v540, %v541
          %v543 = vrot.slane %v542, 2
          %v544 = vadd.f32 %v542, %v543
          %v545 = vrot.slane %v544, 1
          %v546 = vadd.f32 %v544, %v545
          %v547 = vsel %vm380, %v519, 0.0
          %v548 = vrot.slane %v547, 4
          %v549 = vadd.f32 %v547, %v548
          %v550 = vrot.slane %v549, 2
          %v551 = vadd.f32 %v549, %v550
          %v552 = vrot.slane %v551, 1
          %v553 = vadd.f32 %v551, %v552
          %v554 = vsel %vm380, %v520, 0.0
          %v555 = vrot.slane %v554, 4
          %v556 = vadd.f32 %v554, %v555
          %v557 = vrot.slane %v556, 2
          %v558 = vadd.f32 %v556, %v557
          %v559 = vrot.slane %v558, 1
          %v560 = vadd.f32 %v558, %v559
          %v561 = vsel %vm380, %v521, 0.0
          %v562 = vrot.slane %v561, 4
          %v563 = vadd.f32 %v561, %v562
          %v564 = vrot.slane %v563, 2
          %v565 = vadd.f32 %v563, %v564
          %v566 = vrot.slane %v565, 1
          %v567 = vadd.f32 %v565, %v566
          %v568 = vsel %vm380, %v522, 0.0
          %v569 = vrot.slane %v568, 4
          %v570 = vadd.f32 %v568, %v569
          %v571 = vrot.slane %v570, 2
          %v572 = vadd.f32 %v570, %v571
          %v573 = vrot.slane %v572, 1
          %v574 = vadd.f32 %v572, %v573
          %v575 = vsel %vm380, %v523, 0.0
          %v576 = vrot.slane %v575, 4
          %v577 = vadd.f32 %v575, %v576
          %v578 = vrot.slane %v577, 2
          %v579 = vadd.f32 %v577, %v578
          %v580 = vrot.slane %v579, 1
          %v581 = vadd.f32 %v579, %v580
          %v582 = vsel %vm380, %v524, 0.0
          %v583 = vrot.slane %v582, 4
          %v584 = vadd.f32 %v582, %v583
          %v585 = vrot.slane %v584, 2
          %v586 = vadd.f32 %v584, %v585
          %v587 = vrot.slane %v586, 1
          %v588 = vadd.f32 %v586, %v587
          %v589 = vadd.f32 %v539, %v377
          %v590 = vadd.f32 %v546, %v377
          %v591 = vadd.f32 %v553, %v377
          %v592 = vadd.f32 %v560, %v377
          %v593 = vadd.f32 %v567, %v377
          %v594 = vadd.f32 %v574, %v377
          %v595 = vadd.f32 %v581, %v377
          %v596 = vadd.f32 %v588, %v377
          %v605 = vrot.slane %v368, 4
          %v606 = vrot.slane %v369, 4
          %v607 = vrot.slane %v370, 4
          %v608 = vrot.slane %v371, 4
          %v609 = vrot.slane %v372, 4
          %v610 = vrot.slane %v373, 4
          %v611 = vrot.slane %v374, 4
          %v612 = vrot.slane %v375, 4
          %v621 = vsel %vm380, %v605, 0.0
          %v622 = vrot.slane %v621, 4
          %v623 = vadd.f32 %v621, %v622
          %v624 = vrot.slane %v623, 2
          %v625 = vadd.f32 %v623, %v624
          %v626 = vrot.slane %v625, 1
          %v627 = vadd.f32 %v625, %v626
          %v628 = vsel %vm380, %v606, 0.0
          %v629 = vrot.slane %v628, 4
          %v630 = vadd.f32 %v628, %v629
          %v631 = vrot.slane %v630, 2
          %v632 = vadd.f32 %v630, %v631
          %v633 = vrot.slane %v632, 1
          %v634 = vadd.f32 %v632, %v633
          %v635 = vsel %vm380, %v607, 0.0
          %v636 = vrot.slane %v635, 4
          %v637 = vadd.f32 %v635, %v636
          %v638 = vrot.slane %v637, 2
          %v639 = vadd.f32 %v637, %v638
          %v640 = vrot.slane %v639, 1
          %v641 = vadd.f32 %v639, %v640
          %v642 = vsel %vm380, %v608, 0.0
          %v643 = vrot.slane %v642, 4
          %v644 = vadd.f32 %v642, %v643
          %v645 = vrot.slane %v644, 2
          %v646 = vadd.f32 %v644, %v645
          %v647 = vrot.slane %v646, 1
          %v648 = vadd.f32 %v646, %v647
          %v649 = vsel %vm380, %v609, 0.0
          %v650 = vrot.slane %v649, 4
          %v651 = vadd.f32 %v649, %v650
          %v652 = vrot.slane %v651, 2
          %v653 = vadd.f32 %v651, %v652
          %v654 = vrot.slane %v653, 1
          %v655 = vadd.f32 %v653, %v654
          %v656 = vsel %vm380, %v610, 0.0
          %v657 = vrot.slane %v656, 4
          %v658 = vadd.f32 %v656, %v657
          %v659 = vrot.slane %v658, 2
          %v660 = vadd.f32 %v658, %v659
          %v661 = vrot.slane %v660, 1
          %v662 = vadd.f32 %v660, %v661
          %v663 = vsel %vm380, %v611, 0.0
          %v664 = vrot.slane %v663, 4
          %v665 = vadd.f32 %v663, %v664
          %v666 = vrot.slane %v665, 2
          %v667 = vadd.f32 %v665, %v666
          %v668 = vrot.slane %v667, 1
          %v669 = vadd.f32 %v667, %v668
          %v670 = vsel %vm380, %v612, 0.0
          %v671 = vrot.slane %v670, 4
          %v672 = vadd.f32 %v670, %v671
          %v673 = vrot.slane %v672, 2
          %v674 = vadd.f32 %v672, %v673
          %v675 = vrot.slane %v674, 1
          %v676 = vadd.f32 %v674, %v675
          %v677 = vadd.f32 %v627, %v379
          %v678 = vadd.f32 %v634, %v379
          %v679 = vadd.f32 %v641, %v379
          %v680 = vadd.f32 %v648, %v379
          %v681 = vadd.f32 %v655, %v379
          %v682 = vadd.f32 %v662, %v379
          %v683 = vadd.f32 %v669, %v379
          %v684 = vadd.f32 %v676, %v379
          %v693 = vcombine.low %v437, %v438
          %v694 = vcombine.low %v439, %v440
          %v695 = vcombine.low %v441, %v442
          %v696 = vcombine.low %v443, %v444
          %v698 = vunpack.c.l.s4 1966171168
          %v699 = vunpack.c.0.s8 %v698
          %v700 = vlaneseq
          %v701 = vshrl.u32 %v700, 7
          %v702 = vsub.s32 %v699, %v701
          %v703 = vrot.slane %v693, %v702
          %v705 = vunpack.c.l.s4 1966171168
          %v706 = vunpack.c.0.s8 %v705
          %v707 = vlaneseq
          %v708 = vshrl.u32 %v707, 7
          %v709 = vsub.s32 %v706, %v708
          %v710 = vrot.slane %v694, %v709
          %v712 = vunpack.c.l.s4 1966171168
          %v713 = vunpack.c.0.s8 %v712
          %v714 = vlaneseq
          %v715 = vshrl.u32 %v714, 7
          %v716 = vsub.s32 %v713, %v715
          %v717 = vrot.slane %v695, %v716
          %v719 = vunpack.c.l.s4 1966171168
          %v720 = vunpack.c.0.s8 %v719
          %v721 = vlaneseq
          %v722 = vshrl.u32 %v721, 7
          %v723 = vsub.s32 %v720, %v722
          %v724 = vrot.slane %v696, %v723
          %v725 = vcombine.low %v703, %v710
          %v726 = vcombine.low %v717, %v724
          %v728 = vunpack.c.l.s4 1966171168
          %v729 = vunpack.c.0.s8 %v728
          %v730 = vlaneseq
          %v731 = vshrl.u32 %v730, 7
          %v732 = vsub.s32 %v729, %v731
          %v733 = vrot.slane %v725, %v732
          %v735 = vunpack.c.l.s4 1966171168
          %v736 = vunpack.c.0.s8 %v735
          %v737 = vlaneseq
          %v738 = vshrl.u32 %v737, 7
          %v739 = vsub.s32 %v736, %v738
          %v740 = vrot.slane %v726, %v739
          %v741 = vcombine.low %v733, %v740
          %s743 = sshra.s32 %s314, 7
          %s744 = sand.u32 %s314, 127
          %s745 = smul.addr %s743, 2
          %s746 = scalar_lea.vmem [#allocation2], %s745
          %747 = vst [vmem:[%s746] ss:$2 sm:$0xff] %v741
          %v756 = vcombine.low %v501, %v502
          %v757 = vcombine.low %v503, %v504
          %v758 = vcombine.low %v505, %v506
          %v759 = vcombine.low %v507, %v508
          %v761 = vunpack.c.l.s4 1966171168
          %v762 = vunpack.c.0.s8 %v761
          %v763 = vlaneseq
          %v764 = vshrl.u32 %v763, 7
          %v765 = vsub.s32 %v762, %v764
          %v766 = vrot.slane %v756, %v765
          %v768 = vunpack.c.l.s4 1966171168
          %v769 = vunpack.c.0.s8 %v768
          %v770 = vlaneseq
          %v771 = vshrl.u32 %v770, 7
          %v772 = vsub.s32 %v769, %v771
          %v773 = vrot.slane %v757, %v772
          %v775 = vunpack.c.l.s4 1966171168
          %v776 = vunpack.c.0.s8 %v775
          %v777 = vlaneseq
          %v778 = vshrl.u32 %v777, 7
          %v779 = vsub.s32 %v776, %v778
          %v780 = vrot.slane %v758, %v779
          %v782 = vunpack.c.l.s4 1966171168
          %v783 = vunpack.c.0.s8 %v782
          %v784 = vlaneseq
          %v785 = vshrl.u32 %v784, 7
          %v786 = vsub.s32 %v783, %v785
          %v787 = vrot.slane %v759, %v786
          %v788 = vcombine.low %v766, %v773
          %v789 = vcombine.low %v780, %v787
          %v791 = vunpack.c.l.s4 1966171168
          %v792 = vunpack.c.0.s8 %v791
          %v793 = vlaneseq
          %v794 = vshrl.u32 %v793, 7
          %v795 = vsub.s32 %v792, %v794
          %v796 = vrot.slane %v788, %v795
          %v798 = vunpack.c.l.s4 1966171168
          %v799 = vunpack.c.0.s8 %v798
          %v800 = vlaneseq
          %v801 = vshrl.u32 %v800, 7
          %v802 = vsub.s32 %v799, %v801
          %v803 = vrot.slane %v789, %v802
          %v804 = vcombine.low %v796, %v803
          %s806 = smul.addr %s743, 2
          %s807 = scalar_lea.vmem [#allocation3], %s806
          %808 = vst [vmem:[%s807] ss:$2 sm:$0xff] %v804
          %v809 = vld [vmem:[#allocation4] ss:$8 sm:$0xf]
          %v810 = vld [vmem:[#allocation4] ss:$8 sm:$0xf0]
          %v811 = vor.u32 %v809, %v810
          %v812 = vadd.f32 %v811, %v741
          %813 = vst [vmem:[#allocation4] ss:$8 sm:$0xf] %v812
          %814 = vst [vmem:[#allocation4] ss:$8 sm:$0xf0] %v812
          %v815 = vmul.f32 %v437, %v437
          %v816 = vmul.f32 %v438, %v438
          %v817 = vmul.f32 %v439, %v439
          %v818 = vmul.f32 %v440, %v440
          %v819 = vmul.f32 %v441, %v441
          %v820 = vmul.f32 %v442, %v442
          %v821 = vmul.f32 %v443, %v443
          %v822 = vmul.f32 %v444, %v444
          %s823 = scalar_lea.vmem [#allocation4], 1
          %v824 = vld [vmem:[%s823] ss:$8 sm:$0xf]
          %v825 = vld [vmem:[%s823] ss:$8 sm:$0xf0]
          %v826 = vor.u32 %v824, %v825
          %v835 = vcombine.low %v815, %v816
          %v836 = vcombine.low %v817, %v818
          %v837 = vcombine.low %v819, %v820
          %v838 = vcombine.low %v821, %v822
          %v840 = vunpack.c.l.s4 1966171168
          %v841 = vunpack.c.0.s8 %v840
          %v842 = vlaneseq
          %v843 = vshrl.u32 %v842, 7
          %v844 = vsub.s32 %v841, %v843
          %v845 = vrot.slane %v835, %v844
          %v847 = vunpack.c.l.s4 1966171168
          %v848 = vunpack.c.0.s8 %v847
          %v849 = vlaneseq
          %v850 = vshrl.u32 %v849, 7
          %v851 = vsub.s32 %v848, %v850
          %v852 = vrot.slane %v836, %v851
          %v854 = vunpack.c.l.s4 1966171168
          %v855 = vunpack.c.0.s8 %v854
          %v856 = vlaneseq
          %v857 = vshrl.u32 %v856, 7
          %v858 = vsub.s32 %v855, %v857
          %v859 = vrot.slane %v837, %v858
          %v861 = vunpack.c.l.s4 1966171168
          %v862 = vunpack.c.0.s8 %v861
          %v863 = vlaneseq
          %v864 = vshrl.u32 %v863, 7
          %v865 = vsub.s32 %v862, %v864
          %v866 = vrot.slane %v838, %v865
          %v867 = vcombine.low %v845, %v852
          %v868 = vcombine.low %v859, %v866
          %v870 = vunpack.c.l.s4 1966171168
          %v871 = vunpack.c.0.s8 %v870
          %v872 = vlaneseq
          %v873 = vshrl.u32 %v872, 7
          %v874 = vsub.s32 %v871, %v873
          %v875 = vrot.slane %v867, %v874
          %v877 = vunpack.c.l.s4 1966171168
          %v878 = vunpack.c.0.s8 %v877
          %v879 = vlaneseq
          %v880 = vshrl.u32 %v879, 7
          %v881 = vsub.s32 %v878, %v880
          %v882 = vrot.slane %v868, %v881
          %v883 = vcombine.low %v875, %v882
          %v885 = vadd.f32 %v826, %v883
          %886 = vst [vmem:[%s823] ss:$8 sm:$0xf] %v885
          %887 = vst [vmem:[%s823] ss:$8 sm:$0xf0] %v885
          %s888 = scalar_lea.vmem [#allocation4], 2
          %v889 = vld [vmem:[%s888] ss:$8 sm:$0xf]
          %v890 = vld [vmem:[%s888] ss:$8 sm:$0xf0]
          %v891 = vor.u32 %v889, %v890
          %v892 = vadd.f32 %v891, %v804
          %893 = vst [vmem:[%s888] ss:$8 sm:$0xf] %v892
          %894 = vst [vmem:[%s888] ss:$8 sm:$0xf0] %v892
          %v895 = vmul.f32 %v501, %v501
          %v896 = vmul.f32 %v502, %v502
          %v897 = vmul.f32 %v503, %v503
          %v898 = vmul.f32 %v504, %v504
          %v899 = vmul.f32 %v505, %v505
          %v900 = vmul.f32 %v506, %v506
          %v901 = vmul.f32 %v507, %v507
          %v902 = vmul.f32 %v508, %v508
          %s903 = scalar_lea.vmem [#allocation4], 3
          %v904 = vld [vmem:[%s903] ss:$8 sm:$0xf]
          %v905 = vld [vmem:[%s903] ss:$8 sm:$0xf0]
          %v906 = vor.u32 %v904, %v905
          %v915 = vcombine.low %v895, %v896
          %v916 = vcombine.low %v897, %v898
          %v917 = vcombine.low %v899, %v900
          %v918 = vcombine.low %v901, %v902
          %v920 = vunpack.c.l.s4 1966171168
          %v921 = vunpack.c.0.s8 %v920
          %v922 = vlaneseq
          %v923 = vshrl.u32 %v922, 7
          %v924 = vsub.s32 %v921, %v923
          %v925 = vrot.slane %v915, %v924
          %v927 = vunpack.c.l.s4 1966171168
          %v928 = vunpack.c.0.s8 %v927
          %v929 = vlaneseq
          %v930 = vshrl.u32 %v929, 7
          %v931 = vsub.s32 %v928, %v930
          %v932 = vrot.slane %v916, %v931
          %v934 = vunpack.c.l.s4 1966171168
          %v935 = vunpack.c.0.s8 %v934
          %v936 = vlaneseq
          %v937 = vshrl.u32 %v936, 7
          %v938 = vsub.s32 %v935, %v937
          %v939 = vrot.slane %v917, %v938
          %v941 = vunpack.c.l.s4 1966171168
          %v942 = vunpack.c.0.s8 %v941
          %v943 = vlaneseq
          %v944 = vshrl.u32 %v943, 7
          %v945 = vsub.s32 %v942, %v944
          %v946 = vrot.slane %v918, %v945
          %v947 = vcombine.low %v925, %v932
          %v948 = vcombine.low %v939, %v946
          %v950 = vunpack.c.l.s4 1966171168
          %v951 = vunpack.c.0.s8 %v950
          %v952 = vlaneseq
          %v953 = vshrl.u32 %v952, 7
          %v954 = vsub.s32 %v951, %v953
          %v955 = vrot.slane %v947, %v954
          %v957 = vunpack.c.l.s4 1966171168
          %v958 = vunpack.c.0.s8 %v957
          %v959 = vlaneseq
          %v960 = vshrl.u32 %v959, 7
          %v961 = vsub.s32 %v958, %v960
          %v962 = vrot.slane %v948, %v961
          %v963 = vcombine.low %v955, %v962
          %v965 = vadd.f32 %v906, %v963
          %966 = vst [vmem:[%s903] ss:$8 sm:$0xf] %v965
          %967 = vst [vmem:[%s903] ss:$8 sm:$0xf0] %v965
          %v976 = vcombine.low %v589, %v590
          %v977 = vcombine.low %v591, %v592
          %v978 = vcombine.low %v593, %v594
          %v979 = vcombine.low %v595, %v596
          %v981 = vunpack.c.l.s4 1966171168
          %v982 = vunpack.c.0.s8 %v981
          %v983 = vlaneseq
          %v984 = vshrl.u32 %v983, 7
          %v985 = vsub.s32 %v982, %v984
          %v986 = vrot.slane %v976, %v985
          %v988 = vunpack.c.l.s4 1966171168
          %v989 = vunpack.c.0.s8 %v988
          %v990 = vlaneseq
          %v991 = vshrl.u32 %v990, 7
          %v992 = vsub.s32 %v989, %v991
          %v993 = vrot.slane %v977, %v992
          %v995 = vunpack.c.l.s4 1966171168
          %v996 = vunpack.c.0.s8 %v995
          %v997 = vlaneseq
          %v998 = vshrl.u32 %v997, 7
          %v999 = vsub.s32 %v996, %v998
          %v1000 = vrot.slane %v978, %v999
          %v1002 = vunpack.c.l.s4 1966171168
          %v1003 = vunpack.c.0.s8 %v1002
          %v1004 = vlaneseq
          %v1005 = vshrl.u32 %v1004, 7
          %v1006 = vsub.s32 %v1003, %v1005
          %v1007 = vrot.slane %v979, %v1006
          %v1008 = vcombine.low %v986, %v993
          %v1009 = vcombine.low %v1000, %v1007
          %v1011 = vunpack.c.l.s4 1966171168
          %v1012 = vunpack.c.0.s8 %v1011
          %v1013 = vlaneseq
          %v1014 = vshrl.u32 %v1013, 7
          %v1015 = vsub.s32 %v1012, %v1014
          %v1016 = vrot.slane %v1008, %v1015
          %v1018 = vunpack.c.l.s4 1966171168
          %v1019 = vunpack.c.0.s8 %v1018
          %v1020 = vlaneseq
          %v1021 = vshrl.u32 %v1020, 7
          %v1022 = vsub.s32 %v1019, %v1021
          %v1023 = vrot.slane %v1009, %v1022
          %v1024 = vcombine.low %v1016, %v1023
          %s1026 = scalar_lea.vmem %s746, 1 [#allocation2]
          %1027 = vst [vmem:[%s1026] ss:$2 sm:$0xff] %v1024
          %v1036 = vcombine.low %v677, %v678
          %v1037 = vcombine.low %v679, %v680
          %v1038 = vcombine.low %v681, %v682
          %v1039 = vcombine.low %v683, %v684
          %v1041 = vunpack.c.l.s4 1966171168
          %v1042 = vunpack.c.0.s8 %v1041
          %v1043 = vlaneseq
          %v1044 = vshrl.u32 %v1043, 7
          %v1045 = vsub.s32 %v1042, %v1044
          %v1046 = vrot.slane %v1036, %v1045
          %v1048 = vunpack.c.l.s4 1966171168
          %v1049 = vunpack.c.0.s8 %v1048
          %v1050 = vlaneseq
          %v1051 = vshrl.u32 %v1050, 7
          %v1052 = vsub.s32 %v1049, %v1051
          %v1053 = vrot.slane %v1037, %v1052
          %v1055 = vunpack.c.l.s4 1966171168
          %v1056 = vunpack.c.0.s8 %v1055
          %v1057 = vlaneseq
          %v1058 = vshrl.u32 %v1057, 7
          %v1059 = vsub.s32 %v1056, %v1058
          %v1060 = vrot.slane %v1038, %v1059
          %v1062 = vunpack.c.l.s4 1966171168
          %v1063 = vunpack.c.0.s8 %v1062
          %v1064 = vlaneseq
          %v1065 = vshrl.u32 %v1064, 7
          %v1066 = vsub.s32 %v1063, %v1065
          %v1067 = vrot.slane %v1039, %v1066
          %v1068 = vcombine.low %v1046, %v1053
          %v1069 = vcombine.low %v1060, %v1067
          %v1071 = vunpack.c.l.s4 1966171168
          %v1072 = vunpack.c.0.s8 %v1071
          %v1073 = vlaneseq
          %v1074 = vshrl.u32 %v1073, 7
          %v1075 = vsub.s32 %v1072, %v1074
          %v1076 = vrot.slane %v1068, %v1075
          %v1078 = vunpack.c.l.s4 1966171168
          %v1079 = vunpack.c.0.s8 %v1078
          %v1080 = vlaneseq
          %v1081 = vshrl.u32 %v1080, 7
          %v1082 = vsub.s32 %v1079, %v1081
          %v1083 = vrot.slane %v1069, %v1082
          %v1084 = vcombine.low %v1076, %v1083
          %s1086 = scalar_lea.vmem %s807, 1 [#allocation3]
          %1087 = vst [vmem:[%s1086] ss:$2 sm:$0xff] %v1084
          %v1088 = vld [vmem:[#allocation4] ss:$8 sm:$0xf]
          %v1089 = vld [vmem:[#allocation4] ss:$8 sm:$0xf0]
          %v1090 = vor.u32 %v1088, %v1089
          %v1091 = vadd.f32 %v1090, %v1024
          %1092 = vst [vmem:[#allocation4] ss:$8 sm:$0xf] %v1091
          %1093 = vst [vmem:[#allocation4] ss:$8 sm:$0xf0] %v1091
          %v1094 = vmul.f32 %v589, %v589
          %v1095 = vmul.f32 %v590, %v590
          %v1096 = vmul.f32 %v591, %v591
          %v1097 = vmul.f32 %v592, %v592
          %v1098 = vmul.f32 %v593, %v593
          %v1099 = vmul.f32 %v594, %v594
          %v1100 = vmul.f32 %v595, %v595
          %v1101 = vmul.f32 %v596, %v596
          %v1102 = vld [vmem:[%s823] ss:$8 sm:$0xf]
          %v1103 = vld [vmem:[%s823] ss:$8 sm:$0xf0]
          %v1104 = vor.u32 %v1102, %v1103
          %v1113 = vcombine.low %v1094, %v1095
          %v1114 = vcombine.low %v1096, %v1097
          %v1115 = vcombine.low %v1098, %v1099
          %v1116 = vcombine.low %v1100, %v1101
          %v1118 = vunpack.c.l.s4 1966171168
          %v1119 = vunpack.c.0.s8 %v1118
          %v1120 = vlaneseq
          %v1121 = vshrl.u32 %v1120, 7
          %v1122 = vsub.s32 %v1119, %v1121
          %v1123 = vrot.slane %v1113, %v1122
          %v1125 = vunpack.c.l.s4 1966171168
          %v1126 = vunpack.c.0.s8 %v1125
          %v1127 = vlaneseq
          %v1128 = vshrl.u32 %v1127, 7
          %v1129 = vsub.s32 %v1126, %v1128
          %v1130 = vrot.slane %v1114, %v1129
          %v1132 = vunpack.c.l.s4 1966171168
          %v1133 = vunpack.c.0.s8 %v1132
          %v1134 = vlaneseq
          %v1135 = vshrl.u32 %v1134, 7
          %v1136 = vsub.s32 %v1133, %v1135
          %v1137 = vrot.slane %v1115, %v1136
          %v1139 = vunpack.c.l.s4 1966171168
          %v1140 = vunpack.c.0.s8 %v1139
          %v1141 = vlaneseq
          %v1142 = vshrl.u32 %v1141, 7
          %v1143 = vsub.s32 %v1140, %v1142
          %v1144 = vrot.slane %v1116, %v1143
          %v1145 = vcombine.low %v1123, %v1130
          %v1146 = vcombine.low %v1137, %v1144
          %v1148 = vunpack.c.l.s4 1966171168
          %v1149 = vunpack.c.0.s8 %v1148
          %v1150 = vlaneseq
          %v1151 = vshrl.u32 %v1150, 7
          %v1152 = vsub.s32 %v1149, %v1151
          %v1153 = vrot.slane %v1145, %v1152
          %v1155 = vunpack.c.l.s4 1966171168
          %v1156 = vunpack.c.0.s8 %v1155
          %v1157 = vlaneseq
          %v1158 = vshrl.u32 %v1157, 7
          %v1159 = vsub.s32 %v1156, %v1158
          %v1160 = vrot.slane %v1146, %v1159
          %v1161 = vcombine.low %v1153, %v1160
          %v1163 = vadd.f32 %v1104, %v1161
          %1164 = vst [vmem:[%s823] ss:$8 sm:$0xf] %v1163
          %1165 = vst [vmem:[%s823] ss:$8 sm:$0xf0] %v1163
          %v1166 = vld [vmem:[%s888] ss:$8 sm:$0xf]
          %v1167 = vld [vmem:[%s888] ss:$8 sm:$0xf0]
          %v1168 = vor.u32 %v1166, %v1167
          %v1169 = vadd.f32 %v1168, %v1084
          %1170 = vst [vmem:[%s888] ss:$8 sm:$0xf] %v1169
          %1171 = vst [vmem:[%s888] ss:$8 sm:$0xf0] %v1169
          %v1172 = vmul.f32 %v677, %v677
          %v1173 = vmul.f32 %v678, %v678
          %v1174 = vmul.f32 %v679, %v679
          %v1175 = vmul.f32 %v680, %v680
          %v1176 = vmul.f32 %v681, %v681
          %v1177 = vmul.f32 %v682, %v682
          %v1178 = vmul.f32 %v683, %v683
          %v1179 = vmul.f32 %v684, %v684
          %v1180 = vld [vmem:[%s903] ss:$8 sm:$0xf]
          %v1181 = vld [vmem:[%s903] ss:$8 sm:$0xf0]
          %v1182 = vor.u32 %v1180, %v1181
          %v1191 = vcombine.low %v1172, %v1173
          %v1192 = vcombine.low %v1174, %v1175
          %v1193 = vcombine.low %v1176, %v1177
          %v1194 = vcombine.low %v1178, %v1179
          %v1196 = vunpack.c.l.s4 1966171168
          %v1197 = vunpack.c.0.s8 %v1196
          %v1198 = vlaneseq
          %v1199 = vshrl.u32 %v1198, 7
          %v1200 = vsub.s32 %v1197, %v1199
          %v1201 = vrot.slane %v1191, %v1200
          %v1203 = vunpack.c.l.s4 1966171168
          %v1204 = vunpack.c.0.s8 %v1203
          %v1205 = vlaneseq
          %v1206 = vshrl.u32 %v1205, 7
          %v1207 = vsub.s32 %v1204, %v1206
          %v1208 = vrot.slane %v1192, %v1207
          %v1210 = vunpack.c.l.s4 1966171168
          %v1211 = vunpack.c.0.s8 %v1210
          %v1212 = vlaneseq
          %v1213 = vshrl.u32 %v1212, 7
          %v1214 = vsub.s32 %v1211, %v1213
          %v1215 = vrot.slane %v1193, %v1214
          %v1217 = vunpack.c.l.s4 1966171168
          %v1218 = vunpack.c.0.s8 %v1217
          %v1219 = vlaneseq
          %v1220 = vshrl.u32 %v1219, 7
          %v1221 = vsub.s32 %v1218, %v1220
          %v1222 = vrot.slane %v1194, %v1221
          %v1223 = vcombine.low %v1201, %v1208
          %v1224 = vcombine.low %v1215, %v1222
          %v1226 = vunpack.c.l.s4 1966171168
          %v1227 = vunpack.c.0.s8 %v1226
          %v1228 = vlaneseq
          %v1229 = vshrl.u32 %v1228, 7
          %v1230 = vsub.s32 %v1227, %v1229
          %v1231 = vrot.slane %v1223, %v1230
          %v1233 = vunpack.c.l.s4 1966171168
          %v1234 = vunpack.c.0.s8 %v1233
          %v1235 = vlaneseq
          %v1236 = vshrl.u32 %v1235, 7
          %v1237 = vsub.s32 %v1234, %v1236
          %v1238 = vrot.slane %v1224, %v1237
          %v1239 = vcombine.low %v1231, %v1238
          %v1241 = vadd.f32 %v1182, %v1239
          %1242 = vst [vmem:[%s903] ss:$8 sm:$0xf] %v1241
          %1243 = vst [vmem:[%s903] ss:$8 sm:$0xf0] %v1241
        $region52: #{_lambda_.1} parent=39 // pred_fallthru
          _
        %p1244 = scmp.eq.s32.totalorder %s21, 1
        %p1245 = pnand %p1244, %p316
        %p1246 = pneg %p1245
        // Predicated region
        $region53: #{_lambda_.1} parent=39 // pred_check
          _
        $region54: #{_lambda_.1} parent=39 // pred_check_branch
          %1248 = sbr.rel (%p1245) target = $region56
        $region55: #{_lambda_.1} parent=39 // pred_region
          %v1249 = vld [vmem:[#allocation4] ss:$8 sm:$0xf]
          %v1250 = vld [vmem:[#allocation4] ss:$8 sm:$0xf0]
          %v1251 = vor.u32 %v1249, %v1250
          %v1253 = vlaneseq
          %v1254 = vshrl.u32 %v1253, 7
          %v1255 = vsub.s32 0, %v1254
          %v1256 = vrot.slane %v1251, %v1255
          %v1257 = vlaneseq
          %v1258 = vshrl.u32 %v1257, 7
          %v1259 = vsub.s32 1, %v1258
          %v1260 = vrot.slane %v1251, %v1259
          %v1261 = vlaneseq
          %v1262 = vshrl.u32 %v1261, 7
          %v1263 = vsub.s32 2, %v1262
          %v1264 = vrot.slane %v1251, %v1263
          %v1265 = vlaneseq
          %v1266 = vshrl.u32 %v1265, 7
          %v1267 = vsub.s32 3, %v1266
          %v1268 = vrot.slane %v1251, %v1267
          %v1269 = vlaneseq
          %v1270 = vshrl.u32 %v1269, 7
          %v1271 = vsub.s32 4, %v1270
          %v1272 = vrot.slane %v1251, %v1271
          %v1273 = vlaneseq
          %v1274 = vshrl.u32 %v1273, 7
          %v1275 = vsub.s32 5, %v1274
          %v1276 = vrot.slane %v1251, %v1275
          %v1277 = vlaneseq
          %v1278 = vshrl.u32 %v1277, 7
          %v1279 = vsub.s32 6, %v1278
          %v1280 = vrot.slane %v1251, %v1279
          %v1281 = vlaneseq
          %v1282 = vshrl.u32 %v1281, 7
          %v1283 = vsub.s32 7, %v1282
          %v1284 = vrot.slane %v1251, %v1283
          %vm1293 = vcmask 1040384
          %v1294 = vsel %vm1293, %v1256, 0.0
          %v1295 = vsel %vm1293, %v1260, 0.0
          %v1296 = vadd.f32 %v1294, %v1295
          %v1297 = vsel %vm1293, %v1264, 0.0
          %v1298 = vadd.f32 %v1296, %v1297
          %v1299 = vsel %vm1293, %v1268, 0.0
          %v1300 = vadd.f32 %v1298, %v1299
          %v1301 = vsel %vm1293, %v1272, 0.0
          %v1302 = vadd.f32 %v1300, %v1301
          %v1303 = vsel %vm1293, %v1276, 0.0
          %v1304 = vadd.f32 %v1302, %v1303
          %v1305 = vsel %vm1293, %v1280, 0.0
          %v1306 = vadd.f32 %v1304, %v1305
          %v1307 = vsel %vm1293, %v1284, 0.0
          %v1308 = vadd.f32 %v1306, %v1307
          %1309 = vadd.xlane.f32.xlu0 %v1308
          %v1310 = vpop.xlane.xlu0 %1309
          %s1311 = scalar_lea.vmem [#allocation4], 1
          %v1312 = vld [vmem:[%s1311] ss:$8 sm:$0xf]
          %v1313 = vld [vmem:[%s1311] ss:$8 sm:$0xf0]
          %v1314 = vor.u32 %v1312, %v1313
          %v1316 = vlaneseq
          %v1317 = vshrl.u32 %v1316, 7
          %v1318 = vsub.s32 0, %v1317
          %v1319 = vrot.slane %v1314, %v1318
          %v1320 = vlaneseq
          %v1321 = vshrl.u32 %v1320, 7
          %v1322 = vsub.s32 1, %v1321
          %v1323 = vrot.slane %v1314, %v1322
          %v1324 = vlaneseq
          %v1325 = vshrl.u32 %v1324, 7
          %v1326 = vsub.s32 2, %v1325
          %v1327 = vrot.slane %v1314, %v1326
          %v1328 = vlaneseq
          %v1329 = vshrl.u32 %v1328, 7
          %v1330 = vsub.s32 3, %v1329
          %v1331 = vrot.slane %v1314, %v1330
          %v1332 = vlaneseq
          %v1333 = vshrl.u32 %v1332, 7
          %v1334 = vsub.s32 4, %v1333
          %v1335 = vrot.slane %v1314, %v1334
          %v1336 = vlaneseq
          %v1337 = vshrl.u32 %v1336, 7
          %v1338 = vsub.s32 5, %v1337
          %v1339 = vrot.slane %v1314, %v1338
          %v1340 = vlaneseq
          %v1341 = vshrl.u32 %v1340, 7
          %v1342 = vsub.s32 6, %v1341
          %v1343 = vrot.slane %v1314, %v1342
          %v1344 = vlaneseq
          %v1345 = vshrl.u32 %v1344, 7
          %v1346 = vsub.s32 7, %v1345
          %v1347 = vrot.slane %v1314, %v1346
          %v1356 = vsel %vm1293, %v1319, 0.0
          %v1357 = vsel %vm1293, %v1323, 0.0
          %v1358 = vadd.f32 %v1356, %v1357
          %v1359 = vsel %vm1293, %v1327, 0.0
          %v1360 = vadd.f32 %v1358, %v1359
          %v1361 = vsel %vm1293, %v1331, 0.0
          %v1362 = vadd.f32 %v1360, %v1361
          %v1363 = vsel %vm1293, %v1335, 0.0
          %v1364 = vadd.f32 %v1362, %v1363
          %v1365 = vsel %vm1293, %v1339, 0.0
          %v1366 = vadd.f32 %v1364, %v1365
          %v1367 = vsel %vm1293, %v1343, 0.0
          %v1368 = vadd.f32 %v1366, %v1367
          %v1369 = vsel %vm1293, %v1347, 0.0
          %v1370 = vadd.f32 %v1368, %v1369
          %1371 = vadd.xlane.f32.xlu0 %v1370
          %v1372 = vpop.xlane.xlu0 %1371
          %v1373 = vmul.f32 %v1310, 0.00048828125
          %v1374 = vmul.f32 %v1372, 0.00048828125
          %v1375 = vmul.f32 %v1373, %v1373
          %v1376 = vsub.f32 %v1374, %v1375
          %v1377 = vmax.f32 %v1376, 0.0
          %s1378 = sld [smem:[#allocation5 + $0x1]]
          %v1379 = vadd.f32 %v1377, 1e-05
          %v1380 = vrsqrt.pop %v1379
          %v1381 = vstv %s1378
          %v1382 = vmul.f32 %v1381, %v1380
          %s1383 = sld [smem:[#allocation5 + $0x2]]
          %v1384 = vmul.f32 %v1373, %v1382
          %v1385 = vstv %s1383
          %v1386 = vsub.f32 %v1385, %v1384
          %s1387 = scalar_lea.vmem [#allocation4], 2
          %v1388 = vld [vmem:[%s1387] ss:$8 sm:$0xf]
          %v1389 = vld [vmem:[%s1387] ss:$8 sm:$0xf0]
          %v1390 = vor.u32 %v1388, %v1389
          %v1392 = vlaneseq
          %v1393 = vshrl.u32 %v1392, 7
          %v1394 = vsub.s32 0, %v1393
          %v1395 = vrot.slane %v1390, %v1394
          %v1396 = vlaneseq
          %v1397 = vshrl.u32 %v1396, 7
          %v1398 = vsub.s32 1, %v1397
          %v1399 = vrot.slane %v1390, %v1398
          %v1400 = vlaneseq
          %v1401 = vshrl.u32 %v1400, 7
          %v1402 = vsub.s32 2, %v1401
          %v1403 = vrot.slane %v1390, %v1402
          %v1404 = vlaneseq
          %v1405 = vshrl.u32 %v1404, 7
          %v1406 = vsub.s32 3, %v1405
          %v1407 = vrot.slane %v1390, %v1406
          %v1408 = vlaneseq
          %v1409 = vshrl.u32 %v1408, 7
          %v1410 = vsub.s32 4, %v1409
          %v1411 = vrot.slane %v1390, %v1410
          %v1412 = vlaneseq
          %v1413 = vshrl.u32 %v1412, 7
          %v1414 = vsub.s32 5, %v1413
          %v1415 = vrot.slane %v1390, %v1414
          %v1416 = vlaneseq
          %v1417 = vshrl.u32 %v1416, 7
          %v1418 = vsub.s32 6, %v1417
          %v1419 = vrot.slane %v1390, %v1418
          %v1420 = vlaneseq
          %v1421 = vshrl.u32 %v1420, 7
          %v1422 = vsub.s32 7, %v1421
          %v1423 = vrot.slane %v1390, %v1422
          %v1432 = vsel %vm1293, %v1395, 0.0
          %v1433 = vsel %vm1293, %v1399, 0.0
          %v1434 = vadd.f32 %v1432, %v1433
          %v1435 = vsel %vm1293, %v1403, 0.0
          %v1436 = vadd.f32 %v1434, %v1435
          %v1437 = vsel %vm1293, %v1407, 0.0
          %v1438 = vadd.f32 %v1436, %v1437
          %v1439 = vsel %vm1293, %v1411, 0.0
          %v1440 = vadd.f32 %v1438, %v1439
          %v1441 = vsel %vm1293, %v1415, 0.0
          %v1442 = vadd.f32 %v1440, %v1441
          %v1443 = vsel %vm1293, %v1419, 0.0
          %v1444 = vadd.f32 %v1442, %v1443
          %v1445 = vsel %vm1293, %v1423, 0.0
          %v1446 = vadd.f32 %v1444, %v1445
          %1447 = vadd.xlane.f32.xlu0 %v1446
          %v1448 = vpop.xlane.xlu0 %1447
          %s1449 = scalar_lea.vmem [#allocation4], 3
          %v1450 = vld [vmem:[%s1449] ss:$8 sm:$0xf]
          %v1451 = vld [vmem:[%s1449] ss:$8 sm:$0xf0]
          %v1452 = vor.u32 %v1450, %v1451
          %v1454 = vlaneseq
          %v1455 = vshrl.u32 %v1454, 7
          %v1456 = vsub.s32 0, %v1455
          %v1457 = vrot.slane %v1452, %v1456
          %v1458 = vlaneseq
          %v1459 = vshrl.u32 %v1458, 7
          %v1460 = vsub.s32 1, %v1459
          %v1461 = vrot.slane %v1452, %v1460
          %v1462 = vlaneseq
          %v1463 = vshrl.u32 %v1462, 7
          %v1464 = vsub.s32 2, %v1463
          %v1465 = vrot.slane %v1452, %v1464
          %v1466 = vlaneseq
          %v1467 = vshrl.u32 %v1466, 7
          %v1468 = vsub.s32 3, %v1467
          %v1469 = vrot.slane %v1452, %v1468
          %v1470 = vlaneseq
          %v1471 = vshrl.u32 %v1470, 7
          %v1472 = vsub.s32 4, %v1471
          %v1473 = vrot.slane %v1452, %v1472
          %v1474 = vlaneseq
          %v1475 = vshrl.u32 %v1474, 7
          %v1476 = vsub.s32 5, %v1475
          %v1477 = vrot.slane %v1452, %v1476
          %v1478 = vlaneseq
          %v1479 = vshrl.u32 %v1478, 7
          %v1480 = vsub.s32 6, %v1479
          %v1481 = vrot.slane %v1452, %v1480
          %v1482 = vlaneseq
          %v1483 = vshrl.u32 %v1482, 7
          %v1484 = vsub.s32 7, %v1483
          %v1485 = vrot.slane %v1452, %v1484
          %v1494 = vsel %vm1293, %v1457, 0.0
          %v1495 = vsel %vm1293, %v1461, 0.0
          %v1496 = vadd.f32 %v1494, %v1495
          %v1497 = vsel %vm1293, %v1465, 0.0
          %v1498 = vadd.f32 %v1496, %v1497
          %v1499 = vsel %vm1293, %v1469, 0.0
          %v1500 = vadd.f32 %v1498, %v1499
          %v1501 = vsel %vm1293, %v1473, 0.0
          %v1502 = vadd.f32 %v1500, %v1501
          %v1503 = vsel %vm1293, %v1477, 0.0
          %v1504 = vadd.f32 %v1502, %v1503
          %v1505 = vsel %vm1293, %v1481, 0.0
          %v1506 = vadd.f32 %v1504, %v1505
          %v1507 = vsel %vm1293, %v1485, 0.0
          %v1508 = vadd.f32 %v1506, %v1507
          %1509 = vadd.xlane.f32.xlu0 %v1508
          %v1510 = vpop.xlane.xlu0 %1509
          %v1511 = vmul.f32 %v1448, 0.00048828125
          %v1512 = vmul.f32 %v1510, 0.00048828125
          %v1513 = vmul.f32 %v1511, %v1511
          %v1514 = vsub.f32 %v1512, %v1513
          %v1515 = vmax.f32 %v1514, 0.0
          %s1516 = sld [smem:[#allocation5 + $0x4]]
          %v1517 = vadd.f32 %v1515, 1e-05
          %v1518 = vrsqrt.pop %v1517
          %v1519 = vstv %s1516
          %v1520 = vmul.f32 %v1519, %v1518
          %s1521 = sld [smem:[#allocation5 + $0x5]]
          %v1522 = vmul.f32 %v1511, %v1520
          %v1523 = vstv %s1521
          %v1524 = vsub.f32 %v1523, %v1522
          %vm1525 = vcmask 0
          %1526 = vst.msk [vmem:[#allocation4 + $0x6] sm:$0x1] %vm1525, %v1382
          %vm1527 = vcmask 8200
          %1528 = vst.msk [vmem:[#allocation4 + $0x6] sm:$0x1] %vm1527, %v1386
          %vm1529 = vcmask 16400
          %1530 = vst.msk [vmem:[#allocation4 + $0x6] sm:$0x1] %vm1529, %v1520
          %vm1531 = vcmask 24600
          %1532 = vst.msk [vmem:[#allocation4 + $0x6] sm:$0x1] %vm1531, %v1524
        $region56: #{_lambda_.1} parent=39 // pred_fallthru
          _
        // Predicated region
        $region57: #{_lambda_.1} parent=39 // pred_check
          %p1533 = pneg %p1244
        $region58: #{_lambda_.1} parent=39 // pred_check_branch
          %1535 = sbr.rel (%p1533) target = $region60
        $region59: #{_lambda_.1} parent=39 // pred_region
          %v1536 = vld [vmem:[#allocation4 + $0x6] ss:$0 sm:$0xff]
          %s1537 = sld [smem:[#allocation5 + $0x6]]
          %s1538 = sld [smem:[#allocation5 + $0x7]]
          %s1539 = sshra.s32 %s314, 7
          %s1540 = sand.u32 %s314, 127
          %s1541 = smul.addr %s1539, 2
          %s1542 = scalar_lea.vmem [#allocation2], %s1541
          %v1543 = vld [vmem:[%s1542] sm:$0xff]
          %v1544 = vld [vmem:[%s1542 + $0x8] sm:$0xff]
          %s1545 = smul.addr %s1539, 2
          %s1546 = scalar_lea.vmem [#allocation3], %s1545
          %v1547 = vld [vmem:[%s1546] sm:$0xff]
          %v1548 = vld [vmem:[%s1546 + $0x8] sm:$0xff]
          %1550 = vset.pattern.permute.xlu0 0
          %1551 = vperm.xlu0 %1550, %v1536
          %v1552 = vpop.permute.xlu0 %1551
          %v1554 = vmul.f32 %v1543, %v1552
          %v1555 = vmul.f32 %v1544, %v1552
          %1556 = vset.pattern.permute.xlu0 1
          %1557 = vperm.xlu0 %1556, %v1536
          %v1558 = vpop.permute.xlu0 %1557
          %v1560 = vadd.f32 %v1554, %v1558
          %v1561 = vadd.f32 %v1555, %v1558
          %1562 = vset.pattern.permute.xlu0 2
          %1563 = vperm.xlu0 %1562, %v1536
          %v1564 = vpop.permute.xlu0 %1563
          %v1566 = vmul.f32 %v1547, %v1564
          %v1567 = vmul.f32 %v1548, %v1564
          %1568 = vset.pattern.permute.xlu0 3
          %1569 = vperm.xlu0 %1568, %v1536
          %v1570 = vpop.permute.xlu0 %1569
          %v1572 = vadd.f32 %v1566, %v1570
          %v1573 = vadd.f32 %v1567, %v1570
          %v1574 = vsub.f32 %v1560, %v1572
          %v1575 = vsub.f32 %v1561, %v1573
          %v1576 = vand.u32 2147483647, %v1574
          %v1577 = vand.u32 2147483647, %v1575
          %v1578 = vstv %s1537
          %v1579 = vmul.f32 %v1576, %v1578
          %v1580 = vmul.f32 %v1577, %v1578
          %v1581 = vstv %s1538
          %v1582 = vadd.f32 %v1579, %v1581
          %v1583 = vadd.f32 %v1580, %v1581
          %1584 = vst [vmem:[%s1542] sm:$0xff] %v1582
          %1585 = vst [vmem:[%s1542 + $0x8] sm:$0xff] %v1583
          %v1588 = vcombine.high %v1582, %v1582
          %v1590 = vunpack.c.l.s4 1983009808
          %v1591 = vunpack.c.0.s8 %v1590
          %v1592 = vlaneseq
          %v1593 = vshrl.u32 %v1592, 7
          %v1594 = vsub.s32 %v1591, %v1593
          %v1595 = vrot.slane %v1582, %v1594
          %v1597 = vunpack.c.l.s4 1983009808
          %v1598 = vunpack.c.0.s8 %v1597
          %v1599 = vlaneseq
          %v1600 = vshrl.u32 %v1599, 7
          %v1601 = vsub.s32 %v1598, %v1600
          %v1602 = vrot.slane %v1588, %v1601
          %v1603 = vcombine.high %v1595, %v1595
          %v1604 = vcombine.high %v1602, %v1602
          %v1605 = vcombine.high %v1583, %v1583
          %v1607 = vunpack.c.l.s4 1983009808
          %v1608 = vunpack.c.0.s8 %v1607
          %v1609 = vlaneseq
          %v1610 = vshrl.u32 %v1609, 7
          %v1611 = vsub.s32 %v1608, %v1610
          %v1612 = vrot.slane %v1583, %v1611
          %v1614 = vunpack.c.l.s4 1983009808
          %v1615 = vunpack.c.0.s8 %v1614
          %v1616 = vlaneseq
          %v1617 = vshrl.u32 %v1616, 7
          %v1618 = vsub.s32 %v1615, %v1617
          %v1619 = vrot.slane %v1605, %v1618
          %v1620 = vcombine.high %v1612, %v1612
          %v1621 = vcombine.high %v1619, %v1619
          %vm1630 = vcmask 1041408
          %v1631 = vsel %vm1630, %v1595, 0.0
          %v1632 = vrot.slane %v1631, 4
          %v1633 = vadd.f32 %v1631, %v1632
          %v1634 = vrot.slane %v1633, 2
          %v1635 = vadd.f32 %v1633, %v1634
          %v1636 = vrot.slane %v1635, 1
          %v1637 = vadd.f32 %v1635, %v1636
          %v1638 = vsel %vm1630, %v1603, 0.0
          %v1639 = vrot.slane %v1638, 4
          %v1640 = vadd.f32 %v1638, %v1639
          %v1641 = vrot.slane %v1640, 2
          %v1642 = vadd.f32 %v1640, %v1641
          %v1643 = vrot.slane %v1642, 1
          %v1644 = vadd.f32 %v1642, %v1643
          %v1645 = vsel %vm1630, %v1602, 0.0
          %v1646 = vrot.slane %v1645, 4
          %v1647 = vadd.f32 %v1645, %v1646
          %v1648 = vrot.slane %v1647, 2
          %v1649 = vadd.f32 %v1647, %v1648
          %v1650 = vrot.slane %v1649, 1
          %v1651 = vadd.f32 %v1649, %v1650
          %v1652 = vsel %vm1630, %v1604, 0.0
          %v1653 = vrot.slane %v1652, 4
          %v1654 = vadd.f32 %v1652, %v1653
          %v1655 = vrot.slane %v1654, 2
          %v1656 = vadd.f32 %v1654, %v1655
          %v1657 = vrot.slane %v1656, 1
          %v1658 = vadd.f32 %v1656, %v1657
          %v1659 = vsel %vm1630, %v1612, 0.0
          %v1660 = vrot.slane %v1659, 4
          %v1661 = vadd.f32 %v1659, %v1660
          %v1662 = vrot.slane %v1661, 2
          %v1663 = vadd.f32 %v1661, %v1662
          %v1664 = vrot.slane %v1663, 1
          %v1665 = vadd.f32 %v1663, %v1664
          %v1666 = vsel %vm1630, %v1620, 0.0
          %v1667 = vrot.slane %v1666, 4
          %v1668 = vadd.f32 %v1666, %v1667
          %v1669 = vrot.slane %v1668, 2
          %v1670 = vadd.f32 %v1668, %v1669
          %v1671 = vrot.slane %v1670, 1
          %v1672 = vadd.f32 %v1670, %v1671
          %v1673 = vsel %vm1630, %v1619, 0.0
          %v1674 = vrot.slane %v1673, 4
          %v1675 = vadd.f32 %v1673, %v1674
          %v1676 = vrot.slane %v1675, 2
          %v1677 = vadd.f32 %v1675, %v1676
          %v1678 = vrot.slane %v1677, 1
          %v1679 = vadd.f32 %v1677, %v1678
          %v1680 = vsel %vm1630, %v1621, 0.0
          %v1681 = vrot.slane %v1680, 4
          %v1682 = vadd.f32 %v1680, %v1681
          %v1683 = vrot.slane %v1682, 2
          %v1684 = vadd.f32 %v1682, %v1683
          %v1685 = vrot.slane %v1684, 1
          %v1686 = vadd.f32 %v1684, %v1685
          %s1687 = scalar_lea.vmem [#allocation4], 4
          %v1688 = vld [vmem:[%s1687] ss:$8 sm:$0xf]
          %v1689 = vld [vmem:[%s1687] ss:$8 sm:$0xf0]
          %v1690 = vor.u32 %v1688, %v1689
          %v1699 = vcombine.low %v1637, %v1644
          %v1700 = vcombine.low %v1651, %v1658
          %v1701 = vcombine.low %v1665, %v1672
          %v1702 = vcombine.low %v1679, %v1686
          %v1704 = vunpack.c.l.s4 1966171168
          %v1705 = vunpack.c.0.s8 %v1704
          %v1706 = vlaneseq
          %v1707 = vshrl.u32 %v1706, 7
          %v1708 = vsub.s32 %v1705, %v1707
          %v1709 = vrot.slane %v1699, %v1708
          %v1711 = vunpack.c.l.s4 1966171168
          %v1712 = vunpack.c.0.s8 %v1711
          %v1713 = vlaneseq
          %v1714 = vshrl.u32 %v1713, 7
          %v1715 = vsub.s32 %v1712, %v1714
          %v1716 = vrot.slane %v1700, %v1715
          %v1718 = vunpack.c.l.s4 1966171168
          %v1719 = vunpack.c.0.s8 %v1718
          %v1720 = vlaneseq
          %v1721 = vshrl.u32 %v1720, 7
          %v1722 = vsub.s32 %v1719, %v1721
          %v1723 = vrot.slane %v1701, %v1722
          %v1725 = vunpack.c.l.s4 1966171168
          %v1726 = vunpack.c.0.s8 %v1725
          %v1727 = vlaneseq
          %v1728 = vshrl.u32 %v1727, 7
          %v1729 = vsub.s32 %v1726, %v1728
          %v1730 = vrot.slane %v1702, %v1729
          %v1731 = vcombine.low %v1709, %v1716
          %v1732 = vcombine.low %v1723, %v1730
          %v1734 = vunpack.c.l.s4 1966171168
          %v1735 = vunpack.c.0.s8 %v1734
          %v1736 = vlaneseq
          %v1737 = vshrl.u32 %v1736, 7
          %v1738 = vsub.s32 %v1735, %v1737
          %v1739 = vrot.slane %v1731, %v1738
          %v1741 = vunpack.c.l.s4 1966171168
          %v1742 = vunpack.c.0.s8 %v1741
          %v1743 = vlaneseq
          %v1744 = vshrl.u32 %v1743, 7
          %v1745 = vsub.s32 %v1742, %v1744
          %v1746 = vrot.slane %v1732, %v1745
          %v1747 = vcombine.low %v1739, %v1746
          %v1749 = vadd.f32 %v1690, %v1747
          %1750 = vst [vmem:[%s1687] ss:$8 sm:$0xf] %v1749
          %1751 = vst [vmem:[%s1687] ss:$8 sm:$0xf0] %v1749
          %v1752 = vmul.f32 %v1582, %v1582
          %v1753 = vmul.f32 %v1583, %v1583
          %v1756 = vcombine.high %v1752, %v1752
          %v1758 = vunpack.c.l.s4 1983009808
          %v1759 = vunpack.c.0.s8 %v1758
          %v1760 = vlaneseq
          %v1761 = vshrl.u32 %v1760, 7
          %v1762 = vsub.s32 %v1759, %v1761
          %v1763 = vrot.slane %v1752, %v1762
          %v1765 = vunpack.c.l.s4 1983009808
          %v1766 = vunpack.c.0.s8 %v1765
          %v1767 = vlaneseq
          %v1768 = vshrl.u32 %v1767, 7
          %v1769 = vsub.s32 %v1766, %v1768
          %v1770 = vrot.slane %v1756, %v1769
          %v1771 = vcombine.high %v1763, %v1763
          %v1772 = vcombine.high %v1770, %v1770
          %v1773 = vcombine.high %v1753, %v1753
          %v1775 = vunpack.c.l.s4 1983009808
          %v1776 = vunpack.c.0.s8 %v1775
          %v1777 = vlaneseq
          %v1778 = vshrl.u32 %v1777, 7
          %v1779 = vsub.s32 %v1776, %v1778
          %v1780 = vrot.slane %v1753, %v1779
          %v1782 = vunpack.c.l.s4 1983009808
          %v1783 = vunpack.c.0.s8 %v1782
          %v1784 = vlaneseq
          %v1785 = vshrl.u32 %v1784, 7
          %v1786 = vsub.s32 %v1783, %v1785
          %v1787 = vrot.slane %v1773, %v1786
          %v1788 = vcombine.high %v1780, %v1780
          %v1789 = vcombine.high %v1787, %v1787
          %v1798 = vsel %vm1630, %v1763, 0.0
          %v1799 = vrot.slane %v1798, 4
          %v1800 = vadd.f32 %v1798, %v1799
          %v1801 = vrot.slane %v1800, 2
          %v1802 = vadd.f32 %v1800, %v1801
          %v1803 = vrot.slane %v1802, 1
          %v1804 = vadd.f32 %v1802, %v1803
          %v1805 = vsel %vm1630, %v1771, 0.0
          %v1806 = vrot.slane %v1805, 4
          %v1807 = vadd.f32 %v1805, %v1806
          %v1808 = vrot.slane %v1807, 2
          %v1809 = vadd.f32 %v1807, %v1808
          %v1810 = vrot.slane %v1809, 1
          %v1811 = vadd.f32 %v1809, %v1810
          %v1812 = vsel %vm1630, %v1770, 0.0
          %v1813 = vrot.slane %v1812, 4
          %v1814 = vadd.f32 %v1812, %v1813
          %v1815 = vrot.slane %v1814, 2
          %v1816 = vadd.f32 %v1814, %v1815
          %v1817 = vrot.slane %v1816, 1
          %v1818 = vadd.f32 %v1816, %v1817
          %v1819 = vsel %vm1630, %v1772, 0.0
          %v1820 = vrot.slane %v1819, 4
          %v1821 = vadd.f32 %v1819, %v1820
          %v1822 = vrot.slane %v1821, 2
          %v1823 = vadd.f32 %v1821, %v1822
          %v1824 = vrot.slane %v1823, 1
          %v1825 = vadd.f32 %v1823, %v1824
          %v1826 = vsel %vm1630, %v1780, 0.0
          %v1827 = vrot.slane %v1826, 4
          %v1828 = vadd.f32 %v1826, %v1827
          %v1829 = vrot.slane %v1828, 2
          %v1830 = vadd.f32 %v1828, %v1829
          %v1831 = vrot.slane %v1830, 1
          %v1832 = vadd.f32 %v1830, %v1831
          %v1833 = vsel %vm1630, %v1788, 0.0
          %v1834 = vrot.slane %v1833, 4
          %v1835 = vadd.f32 %v1833, %v1834
          %v1836 = vrot.slane %v1835, 2
          %v1837 = vadd.f32 %v1835, %v1836
          %v1838 = vrot.slane %v1837, 1
          %v1839 = vadd.f32 %v1837, %v1838
          %v1840 = vsel %vm1630, %v1787, 0.0
          %v1841 = vrot.slane %v1840, 4
          %v1842 = vadd.f32 %v1840, %v1841
          %v1843 = vrot.slane %v1842, 2
          %v1844 = vadd.f32 %v1842, %v1843
          %v1845 = vrot.slane %v1844, 1
          %v1846 = vadd.f32 %v1844, %v1845
          %v1847 = vsel %vm1630, %v1789, 0.0
          %v1848 = vrot.slane %v1847, 4
          %v1849 = vadd.f32 %v1847, %v1848
          %v1850 = vrot.slane %v1849, 2
          %v1851 = vadd.f32 %v1849, %v1850
          %v1852 = vrot.slane %v1851, 1
          %v1853 = vadd.f32 %v1851, %v1852
          %s1854 = scalar_lea.vmem [#allocation4], 5
          %v1855 = vld [vmem:[%s1854] ss:$8 sm:$0xf]
          %v1856 = vld [vmem:[%s1854] ss:$8 sm:$0xf0]
          %v1857 = vor.u32 %v1855, %v1856
          %v1866 = vcombine.low %v1804, %v1811
          %v1867 = vcombine.low %v1818, %v1825
          %v1868 = vcombine.low %v1832, %v1839
          %v1869 = vcombine.low %v1846, %v1853
          %v1871 = vunpack.c.l.s4 1966171168
          %v1872 = vunpack.c.0.s8 %v1871
          %v1873 = vlaneseq
          %v1874 = vshrl.u32 %v1873, 7
          %v1875 = vsub.s32 %v1872, %v1874
          %v1876 = vrot.slane %v1866, %v1875
          %v1878 = vunpack.c.l.s4 1966171168
          %v1879 = vunpack.c.0.s8 %v1878
          %v1880 = vlaneseq
          %v1881 = vshrl.u32 %v1880, 7
          %v1882 = vsub.s32 %v1879, %v1881
          %v1883 = vrot.slane %v1867, %v1882
          %v1885 = vunpack.c.l.s4 1966171168
          %v1886 = vunpack.c.0.s8 %v1885
          %v1887 = vlaneseq
          %v1888 = vshrl.u32 %v1887, 7
          %v1889 = vsub.s32 %v1886, %v1888
          %v1890 = vrot.slane %v1868, %v1889
          %v1892 = vunpack.c.l.s4 1966171168
          %v1893 = vunpack.c.0.s8 %v1892
          %v1894 = vlaneseq
          %v1895 = vshrl.u32 %v1894, 7
          %v1896 = vsub.s32 %v1893, %v1895
          %v1897 = vrot.slane %v1869, %v1896
          %v1898 = vcombine.low %v1876, %v1883
          %v1899 = vcombine.low %v1890, %v1897
          %v1901 = vunpack.c.l.s4 1966171168
          %v1902 = vunpack.c.0.s8 %v1901
          %v1903 = vlaneseq
          %v1904 = vshrl.u32 %v1903, 7
          %v1905 = vsub.s32 %v1902, %v1904
          %v1906 = vrot.slane %v1898, %v1905
          %v1908 = vunpack.c.l.s4 1966171168
          %v1909 = vunpack.c.0.s8 %v1908
          %v1910 = vlaneseq
          %v1911 = vshrl.u32 %v1910, 7
          %v1912 = vsub.s32 %v1909, %v1911
          %v1913 = vrot.slane %v1899, %v1912
          %v1914 = vcombine.low %v1906, %v1913
          %v1916 = vadd.f32 %v1857, %v1914
          %1917 = vst [vmem:[%s1854] ss:$8 sm:$0xf] %v1916
          %1918 = vst [vmem:[%s1854] ss:$8 sm:$0xf0] %v1916
        $region60: #{_lambda_.1} parent=39 // pred_fallthru
          _
        %p1919 = scmp.eq.s32.totalorder %s21, 2
        %p1920 = pnand %p1919, %p316
        %p1921 = pneg %p1920
        // Predicated region
        $region61: #{_lambda_.1} parent=39 // pred_check
          _
        $region62: #{_lambda_.1} parent=39 // pred_check_branch
          %1923 = sbr.rel (%p1920) target = $region64
        $region63: #{_lambda_.1} parent=39 // pred_region
          %s1924 = scalar_lea.vmem [#allocation4], 4
          %v1925 = vld [vmem:[%s1924] ss:$8 sm:$0xf]
          %v1926 = vld [vmem:[%s1924] ss:$8 sm:$0xf0]
          %v1927 = vor.u32 %v1925, %v1926
          %v1929 = vlaneseq
          %v1930 = vshrl.u32 %v1929, 7
          %v1931 = vsub.s32 0, %v1930
          %v1932 = vrot.slane %v1927, %v1931
          %v1933 = vlaneseq
          %v1934 = vshrl.u32 %v1933, 7
          %v1935 = vsub.s32 1, %v1934
          %v1936 = vrot.slane %v1927, %v1935
          %v1937 = vlaneseq
          %v1938 = vshrl.u32 %v1937, 7
          %v1939 = vsub.s32 2, %v1938
          %v1940 = vrot.slane %v1927, %v1939
          %v1941 = vlaneseq
          %v1942 = vshrl.u32 %v1941, 7
          %v1943 = vsub.s32 3, %v1942
          %v1944 = vrot.slane %v1927, %v1943
          %v1945 = vlaneseq
          %v1946 = vshrl.u32 %v1945, 7
          %v1947 = vsub.s32 4, %v1946
          %v1948 = vrot.slane %v1927, %v1947
          %v1949 = vlaneseq
          %v1950 = vshrl.u32 %v1949, 7
          %v1951 = vsub.s32 5, %v1950
          %v1952 = vrot.slane %v1927, %v1951
          %v1953 = vlaneseq
          %v1954 = vshrl.u32 %v1953, 7
          %v1955 = vsub.s32 6, %v1954
          %v1956 = vrot.slane %v1927, %v1955
          %v1957 = vlaneseq
          %v1958 = vshrl.u32 %v1957, 7
          %v1959 = vsub.s32 7, %v1958
          %v1960 = vrot.slane %v1927, %v1959
          %vm1969 = vcmask 1040384
          %v1970 = vsel %vm1969, %v1932, 0.0
          %v1971 = vsel %vm1969, %v1936, 0.0
          %v1972 = vadd.f32 %v1970, %v1971
          %v1973 = vsel %vm1969, %v1940, 0.0
          %v1974 = vadd.f32 %v1972, %v1973
          %v1975 = vsel %vm1969, %v1944, 0.0
          %v1976 = vadd.f32 %v1974, %v1975
          %v1977 = vsel %vm1969, %v1948, 0.0
          %v1978 = vadd.f32 %v1976, %v1977
          %v1979 = vsel %vm1969, %v1952, 0.0
          %v1980 = vadd.f32 %v1978, %v1979
          %v1981 = vsel %vm1969, %v1956, 0.0
          %v1982 = vadd.f32 %v1980, %v1981
          %v1983 = vsel %vm1969, %v1960, 0.0
          %v1984 = vadd.f32 %v1982, %v1983
          %1985 = vadd.xlane.f32.xlu0 %v1984
          %v1986 = vpop.xlane.xlu0 %1985
          %s1987 = scalar_lea.vmem [#allocation4], 5
          %v1988 = vld [vmem:[%s1987] ss:$8 sm:$0xf]
          %v1989 = vld [vmem:[%s1987] ss:$8 sm:$0xf0]
          %v1990 = vor.u32 %v1988, %v1989
          %v1992 = vlaneseq
          %v1993 = vshrl.u32 %v1992, 7
          %v1994 = vsub.s32 0, %v1993
          %v1995 = vrot.slane %v1990, %v1994
          %v1996 = vlaneseq
          %v1997 = vshrl.u32 %v1996, 7
          %v1998 = vsub.s32 1, %v1997
          %v1999 = vrot.slane %v1990, %v1998
          %v2000 = vlaneseq
          %v2001 = vshrl.u32 %v2000, 7
          %v2002 = vsub.s32 2, %v2001
          %v2003 = vrot.slane %v1990, %v2002
          %v2004 = vlaneseq
          %v2005 = vshrl.u32 %v2004, 7
          %v2006 = vsub.s32 3, %v2005
          %v2007 = vrot.slane %v1990, %v2006
          %v2008 = vlaneseq
          %v2009 = vshrl.u32 %v2008, 7
          %v2010 = vsub.s32 4, %v2009
          %v2011 = vrot.slane %v1990, %v2010
          %v2012 = vlaneseq
          %v2013 = vshrl.u32 %v2012, 7
          %v2014 = vsub.s32 5, %v2013
          %v2015 = vrot.slane %v1990, %v2014
          %v2016 = vlaneseq
          %v2017 = vshrl.u32 %v2016, 7
          %v2018 = vsub.s32 6, %v2017
          %v2019 = vrot.slane %v1990, %v2018
          %v2020 = vlaneseq
          %v2021 = vshrl.u32 %v2020, 7
          %v2022 = vsub.s32 7, %v2021
          %v2023 = vrot.slane %v1990, %v2022
          %v2032 = vsel %vm1969, %v1995, 0.0
          %v2033 = vsel %vm1969, %v1999, 0.0
          %v2034 = vadd.f32 %v2032, %v2033
          %v2035 = vsel %vm1969, %v2003, 0.0
          %v2036 = vadd.f32 %v2034, %v2035
          %v2037 = vsel %vm1969, %v2007, 0.0
          %v2038 = vadd.f32 %v2036, %v2037
          %v2039 = vsel %vm1969, %v2011, 0.0
          %v2040 = vadd.f32 %v2038, %v2039
          %v2041 = vsel %vm1969, %v2015, 0.0
          %v2042 = vadd.f32 %v2040, %v2041
          %v2043 = vsel %vm1969, %v2019, 0.0
          %v2044 = vadd.f32 %v2042, %v2043
          %v2045 = vsel %vm1969, %v2023, 0.0
          %v2046 = vadd.f32 %v2044, %v2045
          %2047 = vadd.xlane.f32.xlu0 %v2046
          %v2048 = vpop.xlane.xlu0 %2047
          %v2049 = vmul.f32 %v1986, 0.00048828125
          %v2050 = vmul.f32 %v2048, 0.00048828125
          %v2051 = vmul.f32 %v2049, %v2049
          %v2052 = vsub.f32 %v2050, %v2051
          %v2053 = vmax.f32 %v2052, 0.0
          %s2054 = sld [smem:[#allocation5 + $0x8]]
          %v2055 = vadd.f32 %v2053, 1e-05
          %v2056 = vrsqrt.pop %v2055
          %v2057 = vstv %s2054
          %v2058 = vmul.f32 %v2057, %v2056
          %s2059 = sld [smem:[#allocation5 + $0x9]]
          %v2060 = vmul.f32 %v2049, %v2058
          %v2061 = vstv %s2059
          %v2062 = vsub.f32 %v2061, %v2060
          %vm2063 = vcmask 32800
          %2064 = vst.msk [vmem:[#allocation4 + $0x6] sm:$0x1] %vm2063, %v2058
          %vm2065 = vcmask 41000
          %2066 = vst.msk [vmem:[#allocation4 + $0x6] sm:$0x1] %vm2065, %v2062
        $region64: #{_lambda_.1} parent=39 // pred_fallthru
          _
        // Predicated region
        $region65: #{_lambda_.1} parent=39 // pred_check
          %p2067 = pneg %p1919
        $region66: #{_lambda_.1} parent=39 // pred_check_branch
          %2069 = sbr.rel (%p2067) target = $region68
        $region67: #{_lambda_.1} parent=39 // pred_region
          %v2070 = vld [vmem:[#allocation4 + $0x6] ss:$0 sm:$0xff]
          %s2071 = sshra.s32 %s314, 7
          %s2072 = sand.u32 %s314, 127
          %s2073 = smul.addr %s2071, 2
          %s2074 = scalar_lea.vmem [#allocation2], %s2073
          %v2075 = vld [vmem:[%s2074] sm:$0xff]
          %v2076 = vld [vmem:[%s2074 + $0x8] sm:$0xff]
          %2078 = vset.pattern.permute.xlu0 4
          %2079 = vperm.xlu0 %2078, %v2070
          %v2080 = vpop.permute.xlu0 %2079
          %v2082 = vmul.f32 %v2075, %v2080
          %v2083 = vmul.f32 %v2076, %v2080
          %2084 = vset.pattern.permute.xlu0 5
          %2085 = vperm.xlu0 %2084, %v2070
          %v2086 = vpop.permute.xlu0 %2085
          %v2088 = vadd.f32 %v2082, %v2086
          %v2089 = vadd.f32 %v2083, %v2086
          %v2090 = vxor.u32 %v2088, 2147483648
          %v2091 = vxor.u32 %v2089, 2147483648
          %v2092 = vmul.f32 %v2090, 1.442695
          %v2093 = vpow.pop %v2092
          %v2094 = vmul.f32 %v2091, 1.442695
          %v2095 = vpow.pop %v2094
          %v2096 = vadd.f32 %v2093, 1.0
          %v2097 = vadd.f32 %v2095, 1.0
          %v2098 = vrcp.pop %v2096
          %v2099 = vmul.f32 1.0, %v2098
          %v2100 = vrcp.pop %v2097
          %v2101 = vmul.f32 1.0, %v2100
          %2102 = vst [vmem:[%s310] sm:$0xff] %v2099
          %2103 = vst [vmem:[%s310 + $0x8] sm:$0xff] %v2101
        $region68: #{_lambda_.1} parent=39 // pred_fallthru
          _
        %p2104 = scmp.eq.s32.totalorder %s21, 2
        %s2105 = scalar_select %p2104, %s22, 0
        %s2106 = smul.u32 8, %s2105
        %p2107 = scmp.lt.s32.totalorder %s2106, 7
        %s2108 = scalar_select %p2107, %s2106, 7
        %s2109 = smul.addr %s2108, 2
        %s2110 = scalar_lea.vmem %s5, %s2109
        // Predicated region
        $region69: #{_lambda_.1} parent=39 // pred_check
          %p2111 = pneg %p174
        $region70: #{_lambda_.1} parent=39 // pred_check_branch
          %2113 = sbr.rel (%p2111) target = $region72
        $region71: #{_lambda_.1} parent=39 // pred_region
          %p2114 = scmp.eq.s32.totalorder %s21, 2
          %s2115 = scalar_select %p2114, %s22, 0
          %s2116 = smul.u32 8, %s2115
        $region72: #{_lambda_.1} parent=39 // pred_fallthru
          _
      $region40: #{_lambda_.1} parent=5 // pred_fallthru
        _
      %p2117 = scmp.le.s32.totalorder 2, %s12
      // Predicated region
      $region73: #{_lambda_.1} parent=5 // pred_check
        %p2118 = pneg %p2117
      $region74: #{_lambda_.1} parent=5 // pred_check_branch
        %2120 = sbr.rel (%p2118) target = $region76
      $region75: #{_lambda_.1} parent=5 // pred_region
        %s2121 = ssub.s32 %s12, 2
        // Predicated region
        $region77: #{_lambda_.1} parent=75 // pred_check
          %p2122 = pneg %p180
        $region78: #{_lambda_.1} parent=75 // pred_check_branch
          %2124 = sbr.rel (%p2122) target = $region80
        $region79: #{_lambda_.1} parent=75 // pred_region
          %p2125 = scmp.eq.s32.totalorder %s23, 2
          %s2126 = scalar_select %p2125, %s24, 0
          %s2127 = smul.u32 8, %s2126
          %p2128 = scmp.lt.s32.totalorder %s2127, 7
          %s2129 = scalar_select %p2128, %s2127, 7
          %s2130 = smul.addr %s2129, 2
          %s2131 = scalar_lea.vmem %s5, %s2130
        $region80: #{_lambda_.1} parent=75 // pred_fallthru
          _
      $region76: #{_lambda_.1} parent=5 // pred_fallthru
        _
    $region6: #{_lambda_.1} parent=1 // loop_footer
      %s16 = sadd.s32 1, %s12
    $region7: #{_lambda_.1} parent=1 // loop_footer_branch
      %11 = sbr.rel target = $region3
    $region8: #{_lambda_.1} parent=1 // loop_exit
      _
    %2132 = vsyncpa [#allocation6], 1
    %s2133 = scalar_lea.sflag [#allocation6], 1
    %2134 = vsyncpa %s2133, 1

</llo_original>
